<compile_context>
chip_gen: v7x
topology: tpu7x:2x2x1
jax: 0.10.0
libtpu: 0.0.40
codegen_flags: <defaults>
</compile_context>

<pallas_src>
import math

import jax
import jax.numpy as jnp
import numpy as np
from jax.experimental import pallas as pl
from jax.experimental.pallas import tpu as pltpu


def _round_up(x, m):
    return ((x + m - 1) // m) * m


def _looks_like_v5e():
    try:
        kind = jax.devices()[0].device_kind.lower()
        return ("v5 lite" in kind) or ("v5e" in kind) or ("v5lite" in kind)
    except Exception:
        return False


def _plan_tiles(n, cp, cbytes, tile_q, tile_k):
    """Pick (tile_q, tile_k, padded N, vmem_limit) under an explicit VMEM budget."""
    n8 = _round_up(n, 8)

    if tile_q is None:
        # 128 rows matches v5e's 4x128x128 MXU; 256 fills v6e/v7x.
        tile_q = 128 if _looks_like_v5e() else 256
    tile_q = max(8, min(_round_up(tile_q, 8), n8))

    if tile_k is None:
        full = _round_up(n, tile_q)
        # Keep all keys in one score block unless it gets large, then chunk.
        tile_k = full if full <= 2048 else 1024
    tile_k = max(8, _round_up(tile_k, 8))

    def pad_n(tq, tk):
        return _round_up(n, math.lcm(tq, tk))

    def vmem_est(tq, tk, npad):
        kv = 2 * 2 * npad * cp * cbytes          # K, V (double-buffered blocks)
        xb = 2 * tq * cp * cbytes                # x tile (double-buffered)
        wb = 2 * (cp * cp * cbytes + cp * 4)     # Wq^T + bias
        ob = 2 * tq * cp * cbytes                # output tile
        sc = tq * cp * 4 + 2 * tq * 128 * 4      # f32 acc / m / l scratch (padded)
        se = 2 * tq * tk * 4                     # score + prob blocks (f32)
        return kv + xb + wb + ob + sc + se

    budget = 40 << 20                            # fits v5e/v6e scoped & v7x physical VMEM
    npad = pad_n(tile_q, tile_k)
    while vmem_est(tile_q, tile_k, npad) > budget and (tile_k > 256 or tile_q > 32):
        if tile_k > 256:
            tile_k = max(256, tile_k // 2)
        else:
            tile_q = max(32, _round_up(tile_q // 2, 8))
        npad = pad_n(tile_q, tile_k)
    # TODO(synk): if resident K/V alone (~4*npad*cp*cbytes) still exceeds the budget
    # (very large images), stream K/V from HBM over a third grid axis (flash-style)
    # instead of keeping them VMEM-resident.

    vmem_limit = int(min(max(vmem_est(tile_q, tile_k, npad) + (4 << 20), 16 << 20),
                         64 << 20))
    return tile_q, tile_k, npad, vmem_limit


def _make_kernel(*, tile_k, nk, n_valid, n_pad, cdt):
    need_mask = n_pad > n_valid

    def kernel(x_ref, wq_ref, bq_ref, k_ref, v_ref, o_ref, acc_ref, m_ref, l_ref):
        # Q projection for this query tile (weights pre-transposed -> no XLU
        # transpose); f32 accumulate, then cast back to the MXU dtype.
        q = (jnp.dot(x_ref[...], wq_ref[...], preferred_element_type=jnp.float32)
             + bq_ref[...]).astype(cdt)

        def scores(k_chunk, chunk_start):
            # scores[i, j] = sum_c q[i, c] * k[j, c]; channel dims contracted
            # directly (standard flash pattern, no materialized k.T).
            s = jax.lax.dot_general(
                q, k_chunk,
                dimension_numbers=(((1,), (1,)), ((), ())),
                preferred_element_type=jnp.float32)
            if need_mask:
                kidx = chunk_start + jax.lax.broadcasted_iota(jnp.int32, s.shape, 1)
                s = jnp.where(kidx < n_valid, s, -jnp.inf)
            return s

        if nk == 1:
            # All keys handled in one resident score block.
            s = scores(k_ref[...], 0)
            s = s - jnp.max(s, axis=-1, keepdims=True)
            e = jnp.exp(s)
            inv = pl.reciprocal(jnp.sum(e, axis=-1, keepdims=True), approx=True)
            out = jnp.dot(e.astype(cdt), v_ref[...],
                          preferred_element_type=jnp.float32)
            o_ref[...] = (out * inv).astype(o_ref.dtype)
        else:
            # Online softmax over key chunks of the VMEM-resident K/V: keeps the
            # score block at O(tile_q * tile_k), independent of N.
            m_ref[...] = jnp.full_like(m_ref, -jnp.inf)
            l_ref[...] = jnp.zeros_like(l_ref)
            acc_ref[...] = jnp.zeros_like(acc_ref)

            @pl.loop(0, nk)
            def _(c):
                off = pl.multiple_of(c * tile_k, tile_k)
                s = scores(k_ref[pl.ds(off, tile_k), :], off)
                m_new = jnp.maximum(m_ref[...], jnp.max(s, axis=-1, keepdims=True))
                alpha = jnp.exp(m_ref[...] - m_new)
                p = jnp.exp(s - m_new)
                l_ref[...] = alpha * l_ref[...] + jnp.sum(p, axis=-1, keepdims=True)
                acc_ref[...] = alpha * acc_ref[...] + jnp.dot(
                    p.astype(cdt), v_ref[pl.ds(off, tile_k), :],
                    preferred_element_type=jnp.float32)
                m_ref[...] = m_new

            inv = pl.reciprocal(l_ref[...], approx=True)
            o_ref[...] = (acc_ref[...] * inv).astype(o_ref.dtype)

    return kernel


def self_attention(x_nchw, wq, bq, wk, bk, wv, bv, gamma, *,
                   tile_q=None, tile_k=None, compute_dtype=None):
    """Forward pass of the PyTorch SelfAttention module (NCHW in / NCHW out).

    Weights are the squeezed 1x1-conv kernels (C_out, C_in); biases are (C,);
    gamma is a scalar / shape-(1,) parameter.  compute_dtype selects the MXU
    operand dtype (default bf16; accumulation is always f32).
    """
    B, C, H, W = x_nchw.shape
    N = H * W
    Cp = _round_up(C, 128)                       # lane-dense channel axis
    cdt = jnp.bfloat16 if compute_dtype is None else jnp.dtype(compute_dtype)
    cbytes = jnp.dtype(cdt).itemsize

    tile_q, tile_k, Np, vmem_limit = _plan_tiles(N, Cp, cbytes, tile_q, tile_k)
    nq, nk = Np // tile_q, Np // tile_k

    # NCHW -> (B, Np, Cp); padded rows/channels are exactly zero.
    x = jnp.transpose(x_nchw, (0, 2, 3, 1)).reshape(B, N, C)
    x = jnp.pad(x, ((0, 0), (0, Np - N), (0, Cp - C))).astype(cdt)

    gamma_s = jnp.asarray(gamma, jnp.float32).reshape(())

    def prep_w(w, scale=None):   # (C_out, C_in) -> pre-transposed, padded (Cp, Cp)
        wt = jnp.pad(jnp.transpose(w).astype(jnp.float32),
                     ((0, Cp - C), (0, Cp - C)))
        if scale is not None:
            wt = wt * scale
        return wt.astype(cdt)

    def prep_b(b, scale=None):   # (C,) -> (1, Cp) f32
        bp = jnp.pad(b.reshape(1, C).astype(jnp.float32), ((0, 0), (0, Cp - C)))
        return bp * scale if scale is not None else bp

    wqT, bq2 = prep_w(wq), prep_b(bq)
    wkT, bk2 = prep_w(wk), prep_b(bk)
    # gamma folded into the value projection: gamma*(attn @ V) == attn @ (gamma*V).
    wvT, bv2 = prep_w(wv, gamma_s), prep_b(bv, gamma_s)

    # K / V precomputed outside the grid (f32 accumulate, stored in compute
    # dtype): no cross-qi scratch carry -> both grid axes can be "parallel".
    k = (jnp.einsum('bnc,cd->bnd', x, wkT,
                    preferred_element_type=jnp.float32) + bk2).astype(cdt)
    v = (jnp.einsum('bnc,cd->bnd', x, wvT,
                    preferred_element_type=jnp.float32) + bv2).astype(cdt)

    cost = pl.CostEstimate(
        flops=int(B * (2 * Np * Cp * Cp + 4 * Np * Np * Cp)),
        transcendentals=int(B * Np * Np),
        bytes_accessed=int(cbytes * (4 * B * Np * Cp + Cp * Cp + Cp)),
    )

    kernel = _make_kernel(tile_k=tile_k, nk=nk, n_valid=N, n_pad=Np, cdt=cdt)

    out = pl.pallas_call(
        kernel,
        out_shape=jax.ShapeDtypeStruct((B, Np, Cp), cdt),
        grid=(B, nq),
        in_specs=[
            pl.BlockSpec((None, tile_q, Cp), lambda b, qi: (b, qi, 0)),  # x tile
            pl.BlockSpec((Cp, Cp), lambda b, qi: (0, 0)),                # Wq^T
            pl.BlockSpec((1, Cp), lambda b, qi: (0, 0)),                 # bq
            pl.BlockSpec((None, Np, Cp), lambda b, qi: (b, 0, 0)),       # K (per batch)
            pl.BlockSpec((None, Np, Cp), lambda b, qi: (b, 0, 0)),       # V (per batch)
        ],
        out_specs=pl.BlockSpec((None, tile_q, Cp), lambda b, qi: (b, qi, 0)),
        scratch_shapes=[
            pltpu.VMEM((tile_q, Cp), jnp.float32),   # online-softmax accumulator
            pltpu.VMEM((tile_q, 1), jnp.float32),    # running max
            pltpu.VMEM((tile_q, 1), jnp.float32),    # running sum
        ],
        compiler_params=pltpu.CompilerParams(
            dimension_semantics=("parallel", "parallel"),
            vmem_limit_bytes=vmem_limit),
        cost_estimate=cost,
    )(x, wqT, bq2, k, v)

    # (B, Np, Cp) -> NCHW, dropping padded pixels / channels.
    out = out[:, :N, :C].astype(x_nchw.dtype)
    return jnp.transpose(out.reshape(B, H, W, C), (0, 3, 1, 2))


def self_attention_reference(x_nchw, wq, bq, wk, bk, wv, bv, gamma):
    """Pure-JAX replica of the PyTorch forward (for correctness checking)."""
    B, C, H, W = x_nchw.shape
    N = H * W
    xf = x_nchw.reshape(B, C, N)                                    # (B, C, N)
    q = jnp.einsum('oc,bcn->bon', wq, xf) + bq[None, :, None]       # (B, C, N)
    k = jnp.einsum('oc,bcn->bon', wk, xf) + bk[None, :, None]
    v = jnp.einsum('oc,bcn->bon', wv, xf) + bv[None, :, None]
    qp = jnp.transpose(q, (0, 2, 1))                                # (B, N, C)
    attn = jax.nn.softmax(jnp.einsum('bnc,bcm->bnm', qp, k), axis=-1)
    out = jnp.einsum('bcn,bmn->bcm', v, attn)                       # (B, C, N)
    return jnp.asarray(gamma, x_nchw.dtype).reshape(()) * out.reshape(B, C, H, W)


if __name__ == "__main__":
    B, C, H, W = 2, 4, 16, 16
    key = jax.random.PRNGKey(0)
    kx, kq, kbq, kk, kbk, kv_, kbv, kx2 = jax.random.split(key, 8)

    x = jax.random.normal(kx, (B, C, H, W), dtype=jnp.float32)

    # 1x1 conv weights (C_out, C_in); PyTorch stores (C_out, C_in, 1, 1).
    scale = 1.0 / np.sqrt(C)
    wq = jax.random.uniform(kq, (C, C), jnp.float32, -scale, scale)
    bq = jax.random.uniform(kbq, (C,), jnp.float32, -scale, scale)
    wk = jax.random.uniform(kk, (C, C), jnp.float32, -scale, scale)
    bk = jax.random.uniform(kbk, (C,), jnp.float32, -scale, scale)
    wv = jax.random.uniform(kv_, (C, C), jnp.float32, -scale, scale)
    bv = jax.random.uniform(kbv, (C,), jnp.float32, -scale, scale)
    # PyTorch __init__ sets gamma = 0 (output would be trivially zero);
    # use a deterministic nonzero value so the full compute path is exercised.
    gamma = jnp.array([0.5], dtype=jnp.float32)

    ref = self_attention_reference(x, wq, bq, wk, bk, wv, bv, gamma)

    # 1) Default path: bf16 MXU operands, single resident key block (nk == 1).
    out = jax.block_until_ready(self_attention(x, wq, bq, wk, bk, wv, bv, gamma))
    assert out.shape == x.shape and out.dtype == x.dtype
    np.testing.assert_allclose(np.asarray(out), np.asarray(ref), rtol=5e-2, atol=5e-2)

    # 2) Full-precision compute path (tight parity with the reference).
    out_f32 = jax.block_until_ready(
        self_attention(x, wq, bq, wk, bk, wv, bv, gamma, compute_dtype=jnp.float32))
    np.testing.assert_allclose(np.asarray(out_f32), np.asarray(ref),
                               rtol=1e-2, atol=2e-3)

    # 3) Multiple query tiles + in-kernel key chunking (online-softmax path).
    out_tiled = jax.block_until_ready(
        self_attention(x, wq, bq, wk, bk, wv, bv, gamma, tile_q=64, tile_k=128))
    np.testing.assert_allclose(np.asarray(out_tiled), np.asarray(ref),
                               rtol=5e-2, atol=5e-2)

    # 4) H*W not a multiple of 8: padded key columns are masked to -inf.
    x2 = jax.random.normal(kx2, (1, C, 10, 10), dtype=jnp.float32)
    ref2 = self_attention_reference(x2, wq, bq, wk, bk, wv, bv, gamma)
    out2 = jax.block_until_ready(self_attention(x2, wq, bq, wk, bk, wv, bv, gamma))
    np.testing.assert_allclose(np.asarray(out2), np.asarray(ref2),
                               rtol=5e-2, atol=5e-2)

    print("KERNEL_OK")
</pallas_src>

<mosaic_0001>
module attributes {stable_mosaic.version = 11 : i64} {
  func.func @kernel(%arg0: i32, %arg1: i32, %arg2: memref<1x256x128xbf16, #tpu.memory_space<vmem>>, %arg3: memref<128x128xbf16, #tpu.memory_space<vmem>>, %arg4: memref<1x128xf32, #tpu.memory_space<vmem>>, %arg5: memref<1x256x128xbf16, #tpu.memory_space<vmem>>, %arg6: memref<1x256x128xbf16, #tpu.memory_space<vmem>>, %arg7: memref<1x256x128xbf16, #tpu.memory_space<vmem>>, %arg8: memref<256x128xf32, #tpu.memory_space<vmem>>, %arg9: memref<256x1xf32, #tpu.memory_space<vmem>>, %arg10: memref<256x1xf32, #tpu.memory_space<vmem>>) attributes {dimension_semantics = [#tpu.dimension_semantics<parallel>, #tpu.dimension_semantics<parallel>], iteration_bounds = array<i64: 2, 1>, scalar_prefetch = 0 : i64, scratch_operands = 3 : i64, tpu.core_type = #tpu.core_type<tc>, window_params = [{transform_indices = @transform_0, window_bounds = array<i64: 1, 256, 128>}, {pipeline_mode = #tpu.pipeline_mode<synchronous>, transform_indices = @transform_1, window_bounds = array<i64: 128, 128>}, {pipeline_mode = #tpu.pipeline_mode<synchronous>, transform_indices = @transform_2, window_bounds = array<i64: 1, 128>}, {transform_indices = @transform_3, window_bounds = array<i64: 1, 256, 128>}, {transform_indices = @transform_4, window_bounds = array<i64: 1, 256, 128>}, {transform_indices = @transform_5, window_bounds = array<i64: 1, 256, 128>}]} {
    %c0 = arith.constant 0 : index
    %c0_0 = arith.constant 0 : index
    %c0_1 = arith.constant 0 : index
    %0 = vector.load %arg2[%c0, %c0_0, %c0_1] : memref<1x256x128xbf16, #tpu.memory_space<vmem>>, vector<1x256x128xbf16>
    %1 = vector.shape_cast %0 : vector<1x256x128xbf16> to vector<256x128xbf16>
    %c0_2 = arith.constant 0 : index
    %c0_3 = arith.constant 0 : index
    %2 = vector.load %arg3[%c0_2, %c0_3] : memref<128x128xbf16, #tpu.memory_space<vmem>>, vector<128x128xbf16>
    %cst = arith.constant dense<0.000000e+00> : vector<256x128xf32>
    %3 = tpu.matmul %1, %2, %cst {dimension_numbers = #tpu.dot_dimension_numbers<[1], [0], [0], [1], [0, 0, 1, 1], [], []>} : vector<256x128xbf16>, vector<128x128xbf16>, vector<256x128xf32> -> vector<256x128xf32>
    %c0_4 = arith.constant 0 : index
    %c0_5 = arith.constant 0 : index
    %4 = vector.load %arg4[%c0_4, %c0_5] : memref<1x128xf32, #tpu.memory_space<vmem>>, vector<1x128xf32>
    %5 = vector.broadcast %4 : vector<1x128xf32> to vector<256x128xf32>
    %6 = arith.addf %3, %5 : vector<256x128xf32>
    %7 = arith.truncf %6 : vector<256x128xf32> to vector<256x128xbf16>
    %c0_6 = arith.constant 0 : index
    %c0_7 = arith.constant 0 : index
    %c0_8 = arith.constant 0 : index
    %8 = vector.load %arg5[%c0_6, %c0_7, %c0_8] : memref<1x256x128xbf16, #tpu.memory_space<vmem>>, vector<1x256x128xbf16>
    %9 = vector.shape_cast %8 : vector<1x256x128xbf16> to vector<256x128xbf16>
    %cst_9 = arith.constant dense<0.000000e+00> : vector<256x256xf32>
    %10 = tpu.matmul %7, %9, %cst_9 {dimension_numbers = #tpu.dot_dimension_numbers<[1], [1], [0], [0], [0, 0, 1, 0], [], []>} : vector<256x128xbf16>, vector<256x128xbf16>, vector<256x256xf32> -> vector<256x256xf32>
    %cst_10 = arith.constant dense<0xFF800000> : vector<256xf32>
    %11 = vector.multi_reduction <maximumf>, %10, %cst_10 [1] : vector<256x256xf32> to vector<256xf32>
    %12 = vector.shape_cast %11 : vector<256xf32> to vector<256x1xf32>
    %13 = vector.broadcast %12 : vector<256x1xf32> to vector<256x256xf32>
    %14 = arith.subf %10, %13 : vector<256x256xf32>
    %15 = math.exp %14 : vector<256x256xf32>
    %cst_11 = arith.constant dense<0.000000e+00> : vector<256xf32>
    %16 = vector.multi_reduction <add>, %15, %cst_11 [1] : vector<256x256xf32> to vector<256xf32>
    %17 = vector.shape_cast %16 : vector<256xf32> to vector<256x1xf32>
    %18 = tpu.reciprocal %17 {approx = true} : vector<256x1xf32> -> vector<256x1xf32>
    %19 = arith.truncf %15 : vector<256x256xf32> to vector<256x256xbf16>
    %c0_12 = arith.constant 0 : index
    %c0_13 = arith.constant 0 : index
    %c0_14 = arith.constant 0 : index
    %20 = vector.load %arg6[%c0_12, %c0_13, %c0_14] : memref<1x256x128xbf16, #tpu.memory_space<vmem>>, vector<1x256x128xbf16>
    %21 = vector.shape_cast %20 : vector<1x256x128xbf16> to vector<256x128xbf16>
    %cst_15 = arith.constant dense<0.000000e+00> : vector<256x128xf32>
    %22 = tpu.matmul %19, %21, %cst_15 {dimension_numbers = #tpu.dot_dimension_numbers<[1], [0], [0], [1], [0, 0, 1, 1], [], []>} : vector<256x256xbf16>, vector<256x128xbf16>, vector<256x128xf32> -> vector<256x128xf32>
    %23 = vector.broadcast %18 : vector<256x1xf32> to vector<256x128xf32>
    %24 = arith.mulf %22, %23 : vector<256x128xf32>
    %25 = arith.truncf %24 : vector<256x128xf32> to vector<256x128xbf16>
    %c0_16 = arith.constant 0 : index
    %c0_17 = arith.constant 0 : index
    %c0_18 = arith.constant 0 : index
    %26 = vector.load %arg7[%c0_16, %c0_17, %c0_18] : memref<1x256x128xbf16, #tpu.memory_space<vmem>>, vector<1x256x128xbf16>
    %27 = vector.shape_cast %26 : vector<1x256x128xbf16> to vector<256x128xbf16>
    %28 = vector.shape_cast %25 : vector<256x128xbf16> to vector<1x256x128xbf16>
    tpu.vector_store %arg7[%c0_16, %c0_17, %c0_18], %28 {strides = array<i32>} : memref<1x256x128xbf16, #tpu.memory_space<vmem>>, vector<1x256x128xbf16>,
    return
  }
  func.func @transform_0(%arg0: i32, %arg1: i32) -> (i32, i32, i32) {
    %c0_i32 = arith.constant 0 : i32
    %c0_i32_0 = arith.constant 0 : i32
    return %arg0, %arg1, %c0_i32 : i32, i32, i32
  }
  func.func @transform_1(%arg0: i32, %arg1: i32) -> (i32, i32) {
    %c0_i32 = arith.constant 0 : i32
    %c0_i32_0 = arith.constant 0 : i32
    %c0_i32_1 = arith.constant 0 : i32
    return %c0_i32, %c0_i32_0 : i32, i32
  }
  func.func @transform_2(%arg0: i32, %arg1: i32) -> (i32, i32) {
    %c0_i32 = arith.constant 0 : i32
    %c0_i32_0 = arith.constant 0 : i32
    %c0_i32_1 = arith.constant 0 : i32
    return %c0_i32, %c0_i32_0 : i32, i32
  }
  func.func @transform_3(%arg0: i32, %arg1: i32) -> (i32, i32, i32) {
    %c0_i32 = arith.constant 0 : i32
    %c0_i32_0 = arith.constant 0 : i32
    %c0_i32_1 = arith.constant 0 : i32
    return %arg0, %c0_i32, %c0_i32_0 : i32, i32, i32
  }
  func.func @transform_4(%arg0: i32, %arg1: i32) -> (i32, i32, i32) {
    %c0_i32 = arith.constant 0 : i32
    %c0_i32_0 = arith.constant 0 : i32
    %c0_i32_1 = arith.constant 0 : i32
    return %arg0, %c0_i32, %c0_i32_0 : i32, i32, i32
  }
  func.func @transform_5(%arg0: i32, %arg1: i32) -> (i32, i32, i32) {
    %c0_i32 = arith.constant 0 : i32
    %c0_i32_0 = arith.constant 0 : i32
    return %arg0, %arg1, %c0_i32 : i32, i32, i32
  }
}

</mosaic_0001>

<llo_original>
// kernel: tpu_custom_call.1
$region0: #{tpu_custom_call.1}
  #allocation0 [shape = 'u32[]', space=smem, size = 0x4, offset = 0x4, fixed_abs, tag = 'smem constant byte address 0x4 - core index']
  #allocation1 [shape = 'u32[144,128]{1,0:T(1,128)}', space=vmem, size = 0x12000, scoped, tag = 'internal scratch']
  #allocation2 [shape = 'f32[256,128]{1,0:T(8,128)}', space=vmem, size = 0x20000, scoped, tag = 'scratch operand']
  #allocation3 [shape = 'f32[256,1]{1,0:T(8,128)}', space=vmem, size = 0x20000, scoped, tag = 'scratch operand']
  #allocation4 [shape = 'f32[256,1]{1,0:T(8,128)}', space=vmem, size = 0x20000, scoped, tag = 'scratch operand']
  %s0 = inlined_call_operand.hbm [shape: bf16[2,256,128], index: 0, kind: input, shape index: {}]
  %s1 = inlined_call_operand.hbm [shape: bf16[128,128], index: 1, kind: input, shape index: {}]
  %s2 = inlined_call_operand.vmem [shape: f32[1,128], index: 2, kind: input, shape index: {}]
  %s3 = inlined_call_operand.hbm [shape: bf16[2,256,128], index: 3, kind: input, shape index: {}]
  %s4 = inlined_call_operand.hbm [shape: bf16[2,256,128], index: 4, kind: input, shape index: {}]
  %s5 = inlined_call_operand.hbm [shape: bf16[2,256,128], index: 5, kind: output, shape index: {}]
  %s6 = sld [smem:[#allocation0]]
  $region69: #{tpu_custom_call.1} parent=0
    _
  %s8 = ssub.s32 1, %s6
  %s9 = scalar_select 0, %s8, %s6
  $region1: #{tpu_custom_call.1} parent=0
    #allocation5 [shape = 'u8[131072]{0}', space=vmem, size = 0x20000, scoped, tag = 'input window, operand 0']
    #allocation6 [shape = 's32[2]{0}', space=sflag, size = 0x8, scoped, tag = 'scoped memory for tpu_custom_call.1']
    #allocation7 [shape = 's32[2]{0}', space=sflag, size = 0x8, scoped, tag = 'scoped memory for tpu_custom_call.1']
    #allocation8 [shape = 'u8[32768]{0}', space=vmem, size = 0x8000, scoped, tag = 'input window, operand 1, single buffered']
    #allocation9 [shape = 's32[1]{0}', space=sflag, size = 0x4, scoped, tag = 'scoped memory for tpu_custom_call.1']
    #allocation10 [shape = 'u8[131072]{0}', space=vmem, size = 0x20000, scoped, tag = 'input window, operand 3']
    #allocation11 [shape = 'u8[131072]{0}', space=vmem, size = 0x20000, scoped, tag = 'input window, operand 4']
    #allocation12 [shape = 'u8[131072]{0}', space=vmem, size = 0x20000, scoped, tag = 'output window, operand 0']
    %10 = vsyncpa [#allocation6], 0
    %s11 = scalar_lea.sflag [#allocation6], 1
    %12 = vsyncpa %s11, 0
    %13 = vsyncpa [#allocation9], 0
    %14 = vsyncpa [#allocation7], 0
    %s15 = scalar_lea.sflag [#allocation7], 1
    %16 = vsyncpa %s15, 0
    loop: start=0, step=1, limit=4
    $region2: #{tpu_custom_call.1} parent=1 // loop_pre_header
      _
    $region3: #{tpu_custom_call.1} parent=1 // loop_header
      %s18 = sphi 0, %s22
      %p19 = scmp.ge.s32.totalorder %s18, 4
      %s25 = sphi 0, %s37
      %s26 = sphi 0, %s33
      %s27 = sphi 0, %s25
      %s28 = sphi 0, %s26
      %s29 = sphi 0, %s27
      %s30 = sphi 0, %s28
      %s42 = sphi 0, %s44
      %s45 = sphi 0, %s42
      %s46 = sphi 0, %s45
      %s62 = sphi 0, %s46
      %s66 = sphi 0, %s66
      %s68 = sphi 0, %s66
      %s69 = sphi 0, %s68
      %s83 = sphi 0, %s69
      %s87 = sphi 0, %s87
      %s89 = sphi 0, %s87
      %s90 = sphi 0, %s89
      %s104 = sphi 0, %s90
      %s110 = sphi 0, %s112
      %s113 = sphi 0, %s110
      %s114 = sphi 0, %s113
      %s130 = sphi 0, %s114
      %s136 = sphi 0, %s138
      %s139 = sphi 0, %s136
      %s140 = sphi 0, %s139
      %s156 = sphi 0, %s140
      %s164 = sphi 0, %s166
      %s167 = sphi 0, %s164
      %s168 = sphi 0, %s167
      %s184 = sphi 0, %s168
    $region4: #{tpu_custom_call.1} parent=1 // loop_header_branch
      %21 = sbr.rel (%p19) target = $region8
    $region5: #{tpu_custom_call.1} parent=1 // loop_body
      %s23 = ssub.s32 %s18, 1
      %s24 = ssub.s32 %s18, 2
      %s31 = sadd.s32 1, %s26
      %p32 = scmp.ge.s32.totalorder %s31, 1
      %s33 = scalar_select %p32, 0, %s31
      %s34 = sadd.s32 1, %s25
      %s35 = scalar_select %p32, %s34, %s25
      %p36 = scmp.ge.s32.totalorder %s35, 2
      %s37 = scalar_select %p36, 0, %s35
      %s38 = ssub.s32 %s25, %s37
      %s39 = ssub.s32 %s26, %s33
      %s40 = sor.u32 %s38, %s39
      %p41 = scmp.eq.s32.totalorder %s40, 0
      %s43 = sadd.s32 %s42, 1
      %s44 = scalar_select %p41, %s42, %s43
      %p47 = pneg %p41
      %p48 = scmp.eq.s32.totalorder %s18, 1
      %p49 = por %p47, %p48
      %p50 = scmp.ne.s32.totalorder %s42, %s45
      %p51 = scmp.eq.s32.totalorder %s18, 0
      %p52 = por %p50, %p51
      %p53 = scmp.ne.s32.totalorder %s42, %s45
      %p54 = scmp.eq.s32.totalorder %s23, 1
      %p55 = por %p53, %p54
      %p56 = scmp.ne.s32.totalorder %s45, %s46
      %p57 = scmp.eq.s32.totalorder %s23, 0
      %p58 = por %p56, %p57
      %p59 = scmp.ne.s32.totalorder %s45, %s46
      %p60 = scmp.eq.s32.totalorder %s24, 1
      %p61 = por %p59, %p60
      %p63 = scmp.ne.s32.totalorder %s46, %s62
      %p64 = scmp.eq.s32.totalorder %s24, 0
      %p65 = por %p63, %p64
      %s67 = sadd.s32 %s66, 1
      %p70 = scmp.eq.s32.totalorder %s18, 1
      %p71 = scmp.ne.s32.totalorder %s66, %s68
      %p72 = scmp.eq.s32.totalorder %s18, 0
      %p73 = por %p71, %p72
      %p74 = scmp.ne.s32.totalorder %s66, %s68
      %p75 = scmp.eq.s32.totalorder %s23, 1
      %p76 = por %p74, %p75
      %p77 = scmp.ne.s32.totalorder %s68, %s69
      %p78 = scmp.eq.s32.totalorder %s23, 0
      %p79 = por %p77, %p78
      %p80 = scmp.ne.s32.totalorder %s68, %s69
      %p81 = scmp.eq.s32.totalorder %s24, 1
      %p82 = por %p80, %p81
      %p84 = scmp.ne.s32.totalorder %s69, %s83
      %p85 = scmp.eq.s32.totalorder %s24, 0
      %p86 = por %p84, %p85
      %s88 = sadd.s32 %s87, 1
      %p91 = scmp.eq.s32.totalorder %s18, 1
      %p92 = scmp.ne.s32.totalorder %s87, %s89
      %p93 = scmp.eq.s32.totalorder %s18, 0
      %p94 = por %p92, %p93
      %p95 = scmp.ne.s32.totalorder %s87, %s89
      %p96 = scmp.eq.s32.totalorder %s23, 1
      %p97 = por %p95, %p96
      %p98 = scmp.ne.s32.totalorder %s89, %s90
      %p99 = scmp.eq.s32.totalorder %s23, 0
      %p100 = por %p98, %p99
      %p101 = scmp.ne.s32.totalorder %s89, %s90
      %p102 = scmp.eq.s32.totalorder %s24, 1
      %p103 = por %p101, %p102
      %p105 = scmp.ne.s32.totalorder %s90, %s104
      %p106 = scmp.eq.s32.totalorder %s24, 0
      %p107 = por %p105, %p106
      %s108 = ssub.s32 %s25, %s37
      %p109 = scmp.eq.s32.totalorder %s108, 0
      %s111 = sadd.s32 %s110, 1
      %s112 = scalar_select %p109, %s110, %s111
      %p115 = pneg %p109
      %p116 = scmp.eq.s32.totalorder %s18, 1
      %p117 = por %p115, %p116
      %p118 = scmp.ne.s32.totalorder %s110, %s113
      %p119 = scmp.eq.s32.totalorder %s18, 0
      %p120 = por %p118, %p119
      %p121 = scmp.ne.s32.totalorder %s110, %s113
      %p122 = scmp.eq.s32.totalorder %s23, 1
      %p123 = por %p121, %p122
      %p124 = scmp.ne.s32.totalorder %s113, %s114
      %p125 = scmp.eq.s32.totalorder %s23, 0
      %p126 = por %p124, %p125
      %p127 = scmp.ne.s32.totalorder %s113, %s114
      %p128 = scmp.eq.s32.totalorder %s24, 1
      %p129 = por %p127, %p128
      %p131 = scmp.ne.s32.totalorder %s114, %s130
      %p132 = scmp.eq.s32.totalorder %s24, 0
      %p133 = por %p131, %p132
      %s134 = ssub.s32 %s25, %s37
      %p135 = scmp.eq.s32.totalorder %s134, 0
      %s137 = sadd.s32 %s136, 1
      %s138 = scalar_select %p135, %s136, %s137
      %p141 = pneg %p135
      %p142 = scmp.eq.s32.totalorder %s18, 1
      %p143 = por %p141, %p142
      %p144 = scmp.ne.s32.totalorder %s136, %s139
      %p145 = scmp.eq.s32.totalorder %s18, 0
      %p146 = por %p144, %p145
      %p147 = scmp.ne.s32.totalorder %s136, %s139
      %p148 = scmp.eq.s32.totalorder %s23, 1
      %p149 = por %p147, %p148
      %p150 = scmp.ne.s32.totalorder %s139, %s140
      %p151 = scmp.eq.s32.totalorder %s23, 0
      %p152 = por %p150, %p151
      %p153 = scmp.ne.s32.totalorder %s139, %s140
      %p154 = scmp.eq.s32.totalorder %s24, 1
      %p155 = por %p153, %p154
      %p157 = scmp.ne.s32.totalorder %s140, %s156
      %p158 = scmp.eq.s32.totalorder %s24, 0
      %p159 = por %p157, %p158
      %s160 = ssub.s32 %s25, %s37
      %s161 = ssub.s32 %s26, %s33
      %s162 = sor.u32 %s160, %s161
      %p163 = scmp.eq.s32.totalorder %s162, 0
      %s165 = sadd.s32 %s164, 1
      %s166 = scalar_select %p163, %s164, %s165
      %p169 = pneg %p163
      %p170 = scmp.eq.s32.totalorder %s18, 1
      %p171 = por %p169, %p170
      %p172 = scmp.ne.s32.totalorder %s164, %s167
      %p173 = scmp.eq.s32.totalorder %s18, 0
      %p174 = por %p172, %p173
      %p175 = scmp.ne.s32.totalorder %s164, %s167
      %p176 = scmp.eq.s32.totalorder %s23, 1
      %p177 = por %p175, %p176
      %p178 = scmp.ne.s32.totalorder %s167, %s168
      %p179 = scmp.eq.s32.totalorder %s23, 0
      %p180 = por %p178, %p179
      %p181 = scmp.ne.s32.totalorder %s167, %s168
      %p182 = scmp.eq.s32.totalorder %s24, 1
      %p183 = por %p181, %p182
      %p185 = scmp.ne.s32.totalorder %s168, %s184
      %p186 = scmp.eq.s32.totalorder %s24, 0
      %p187 = por %p185, %p186
      %p188 = scmp.le.s32.totalorder 1, %s18
      %p189 = scmp.lt.s32.totalorder %s18, 3
      %p190 = pnand %p188, %p189
      %p191 = pneg %p190
      // Predicated region
      $region9: #{tpu_custom_call.1} parent=5 // pred_check
        _
      $region10: #{tpu_custom_call.1} parent=5 // pred_check_branch
        %193 = sbr.rel (%p190) target = $region12
      $region11: #{tpu_custom_call.1} parent=5 // pred_region
        %s194 = ssub.s32 %s18, 1
        // Predicated region
        $region13: #{tpu_custom_call.1} parent=11 // pred_check
          %p195 = pneg %p79
        $region14: #{tpu_custom_call.1} parent=11 // pred_check_branch
          %197 = sbr.rel (%p195) target = $region16
        $region15: #{tpu_custom_call.1} parent=11 // pred_region
          %s199 = ssub.s32 1024, 1024
          %200 = vsyncadd [#allocation9], %s199
          %s201 = sshll.u32 [#allocation8], 4
          %s202 = int_to_ptr.vmem [resolvable:$true] %s201
          %207 = dma.hbm_to_vmem [thread:$0]  %s1, 1024, %s202, [#allocation9], 64, 64, 4
        $region16: #{tpu_custom_call.1} parent=11 // pred_fallthru
          _
        // Predicated region
        $region17: #{tpu_custom_call.1} parent=11 // pred_check
          %p208 = pneg %p100
        $region18: #{tpu_custom_call.1} parent=11 // pred_check_branch
          %210 = sbr.rel (%p208) target = $region20
        $region19: #{tpu_custom_call.1} parent=11 // pred_region
          _
        $region20: #{tpu_custom_call.1} parent=11 // pred_fallthru
          _
      $region12: #{tpu_custom_call.1} parent=5 // pred_fallthru
        _
      %p211 = scmp.lt.s32.totalorder %s18, 2
      // Predicated region
      $region21: #{tpu_custom_call.1} parent=5 // pred_check
        %p212 = pneg %p211
      $region22: #{tpu_custom_call.1} parent=5 // pred_check_branch
        %214 = sbr.rel (%p212) target = $region24
      $region23: #{tpu_custom_call.1} parent=5 // pred_region
        // Predicated region
        $region25: #{tpu_custom_call.1} parent=23 // pred_check
          %p215 = pneg %p52
        $region26: #{tpu_custom_call.1} parent=23 // pred_check_branch
          %217 = sbr.rel (%p215) target = $region28
        $region27: #{tpu_custom_call.1} parent=23 // pred_region
          %s218 = sand.u32 %s18, 1
          %s219 = scalar_lea.sflag [#allocation6], %s218
          %s220 = sand.u32 %s42, 1
          %s221 = smul.addr %s220, 128
          %s222 = scalar_lea.vmem [#allocation5], %s221
          %s223 = smul.u32 32, %s26
          %s225 = ssub.s32 2048, 2048
          %226 = vsyncadd %s219, %s225
          %s227 = smul.addr %s25, 32
          %s228 = sadd.s32 %s223, %s227
          %s229 = smul.addr %s228, 64
          %s230 = scalar_lea.hbm %s0, %s229
          %s231 = sshll.u32 %s222, 4
          %s232 = int_to_ptr.vmem [resolvable:$true] %s231
          %237 = dma.hbm_to_vmem [thread:$0]  %s230, 2048, %s232, %s219, 64, 64, 4
        $region28: #{tpu_custom_call.1} parent=23 // pred_fallthru
          _
        // Predicated region
        $region29: #{tpu_custom_call.1} parent=23 // pred_check
          %p238 = pneg %p120
        $region30: #{tpu_custom_call.1} parent=23 // pred_check_branch
          %240 = sbr.rel (%p238) target = $region32
        $region31: #{tpu_custom_call.1} parent=23 // pred_region
          %s241 = sand.u32 %s18, 1
          %s242 = scalar_lea.sflag [#allocation6], %s241
          %s243 = sand.u32 %s110, 1
          %s244 = smul.addr %s243, 128
          %s245 = scalar_lea.vmem [#allocation10], %s244
          %s247 = ssub.s32 2048, 2048
          %248 = vsyncadd %s242, %s247
          %s249 = smul.addr %s25, 32
          %s250 = smul.addr %s249, 64
          %s251 = scalar_lea.hbm %s3, %s250
          %s252 = sshll.u32 %s245, 4
          %s253 = int_to_ptr.vmem [resolvable:$true] %s252
          %258 = dma.hbm_to_vmem [thread:$0]  %s251, 2048, %s253, %s242, 64, 64, 4
        $region32: #{tpu_custom_call.1} parent=23 // pred_fallthru
          _
        // Predicated region
        $region33: #{tpu_custom_call.1} parent=23 // pred_check
          %p259 = pneg %p146
        $region34: #{tpu_custom_call.1} parent=23 // pred_check_branch
          %261 = sbr.rel (%p259) target = $region36
        $region35: #{tpu_custom_call.1} parent=23 // pred_region
          %s262 = sand.u32 %s18, 1
          %s263 = scalar_lea.sflag [#allocation6], %s262
          %s264 = sand.u32 %s136, 1
          %s265 = smul.addr %s264, 128
          %s266 = scalar_lea.vmem [#allocation11], %s265
          %s268 = ssub.s32 2048, 2048
          %269 = vsyncadd %s263, %s268
          %s270 = smul.addr %s25, 32
          %s271 = smul.addr %s270, 64
          %s272 = scalar_lea.hbm %s4, %s271
          %s273 = sshll.u32 %s266, 4
          %s274 = int_to_ptr.vmem [resolvable:$true] %s273
          %279 = dma.hbm_to_vmem [thread:$0]  %s272, 2048, %s274, %s263, 64, 64, 4
        $region36: #{tpu_custom_call.1} parent=23 // pred_fallthru
          _
      $region24: #{tpu_custom_call.1} parent=5 // pred_fallthru
        _
      %p280 = scmp.le.s32.totalorder 1, %s18
      %p281 = scmp.lt.s32.totalorder %s18, 3
      %p282 = pnand %p280, %p281
      %p283 = pneg %p282
      // Predicated region
      $region37: #{tpu_custom_call.1} parent=5 // pred_check
        _
      $region38: #{tpu_custom_call.1} parent=5 // pred_check_branch
        %285 = sbr.rel (%p282) target = $region40
      $region39: #{tpu_custom_call.1} parent=5 // pred_region
        %s286 = ssub.s32 %s18, 1
        %s287 = sand.u32 %s23, 1
        %s288 = scalar_lea.sflag [#allocation6], %s287
        %s289 = sand.u32 %s45, 1
        %s290 = smul.addr %s289, 128
        %s291 = scalar_lea.vmem [#allocation5], %s290
        // Predicated region
        $region41: #{tpu_custom_call.1} parent=39 // pred_check
          %p292 = pneg %p58
        $region42: #{tpu_custom_call.1} parent=39 // pred_check_branch
          %294 = sbr.rel (%p292) target = $region44
        $region43: #{tpu_custom_call.1} parent=39 // pred_region
          %295 = dma.done %s288, 2048
        $region44: #{tpu_custom_call.1} parent=39 // pred_fallthru
          _
        // Predicated region
        $region45: #{tpu_custom_call.1} parent=39 // pred_check
          %p296 = pneg %p79
        $region46: #{tpu_custom_call.1} parent=39 // pred_check_branch
          %298 = sbr.rel (%p296) target = $region48
        $region47: #{tpu_custom_call.1} parent=39 // pred_region
          %299 = dma.done [#allocation9], 1024
        $region48: #{tpu_custom_call.1} parent=39 // pred_fallthru
          _
        %s300 = sand.u32 %s23, 1
        %s301 = scalar_lea.sflag [#allocation6], %s300
        %s302 = sand.u32 %s113, 1
        %s303 = smul.addr %s302, 128
        %s304 = scalar_lea.vmem [#allocation10], %s303
        // Predicated region
        $region49: #{tpu_custom_call.1} parent=39 // pred_check
          %p305 = pneg %p126
        $region50: #{tpu_custom_call.1} parent=39 // pred_check_branch
          %307 = sbr.rel (%p305) target = $region52
        $region51: #{tpu_custom_call.1} parent=39 // pred_region
          %308 = dma.done %s301, 2048
        $region52: #{tpu_custom_call.1} parent=39 // pred_fallthru
          _
        %s309 = sand.u32 %s23, 1
        %s310 = scalar_lea.sflag [#allocation6], %s309
        %s311 = sand.u32 %s139, 1
        %s312 = smul.addr %s311, 128
        %s313 = scalar_lea.vmem [#allocation11], %s312
        // Predicated region
        $region53: #{tpu_custom_call.1} parent=39 // pred_check
          %p314 = pneg %p152
        $region54: #{tpu_custom_call.1} parent=39 // pred_check_branch
          %316 = sbr.rel (%p314) target = $region56
        $region55: #{tpu_custom_call.1} parent=39 // pred_region
          %317 = dma.done %s310, 2048
        $region56: #{tpu_custom_call.1} parent=39 // pred_fallthru
          _
        %s318 = sand.u32 %s23, 1
        %s319 = scalar_lea.sflag [#allocation6], %s318
        %s320 = sand.u32 %s45, 1
        %s321 = smul.addr %s320, 128
        %s322 = scalar_lea.vmem [#allocation5], %s321
        %p323 = pneg %p58
        %p324 = pneg %p55
        %p325 = pneg %p79
        %p326 = pneg %p76
        %p327 = pneg %p100
        %p328 = pneg %p97
        %s329 = sand.u32 %s23, 1
        %s330 = scalar_lea.sflag [#allocation6], %s329
        %s331 = sand.u32 %s113, 1
        %s332 = smul.addr %s331, 128
        %s333 = scalar_lea.vmem [#allocation10], %s332
        %p334 = pneg %p126
        %p335 = pneg %p123
        %s336 = sand.u32 %s23, 1
        %s337 = scalar_lea.sflag [#allocation6], %s336
        %s338 = sand.u32 %s139, 1
        %s339 = smul.addr %s338, 128
        %s340 = scalar_lea.vmem [#allocation11], %s339
        %p341 = pneg %p152
        %p342 = pneg %p149
        %p343 = pneg %p180
        %p344 = pneg %p177
        %s345 = sand.u32 %s167, 1
        %s346 = scalar_lea.sflag [#allocation7], %s345
        %s347 = sand.u32 %s167, 1
        %s348 = smul.addr %s347, 128
        %s349 = scalar_lea.vmem [#allocation12], %s348
        %s350 = smul.u32 32, %s28
        %s351 = smul.u32 32, %s28
        %v353 = vld [vmem:[%s291] sm:$0xf]
        %v354 = vld [vmem:[%s291 + $0x4] sm:$0xf]
        %v355 = vld [vmem:[%s291 + $0x8] sm:$0xf]
        %v356 = vld [vmem:[%s291 + $0xc] sm:$0xf]
        %v357 = vld [vmem:[%s291 + $0x10] sm:$0xf]
        %v358 = vld [vmem:[%s291 + $0x14] sm:$0xf]
        %v359 = vld [vmem:[%s291 + $0x18] sm:$0xf]
        %v360 = vld [vmem:[%s291 + $0x1c] sm:$0xf]
        %v361 = vld [vmem:[%s291 + $0x20] sm:$0xf]
        %v362 = vld [vmem:[%s291 + $0x24] sm:$0xf]
        %v363 = vld [vmem:[%s291 + $0x28] sm:$0xf]
        %v364 = vld [vmem:[%s291 + $0x2c] sm:$0xf]
        %v365 = vld [vmem:[%s291 + $0x30] sm:$0xf]
        %v366 = vld [vmem:[%s291 + $0x34] sm:$0xf]
        %v367 = vld [vmem:[%s291 + $0x38] sm:$0xf]
        %v368 = vld [vmem:[%s291 + $0x3c] sm:$0xf]
        %v369 = vld [vmem:[%s291 + $0x40] sm:$0xf]
        %v370 = vld [vmem:[%s291 + $0x44] sm:$0xf]
        %v371 = vld [vmem:[%s291 + $0x48] sm:$0xf]
        %v372 = vld [vmem:[%s291 + $0x4c] sm:$0xf]
        %v373 = vld [vmem:[%s291 + $0x50] sm:$0xf]
        %v374 = vld [vmem:[%s291 + $0x54] sm:$0xf]
        %v375 = vld [vmem:[%s291 + $0x58] sm:$0xf]
        %v376 = vld [vmem:[%s291 + $0x5c] sm:$0xf]
        %v377 = vld [vmem:[%s291 + $0x60] sm:$0xf]
        %v378 = vld [vmem:[%s291 + $0x64] sm:$0xf]
        %v379 = vld [vmem:[%s291 + $0x68] sm:$0xf]
        %v380 = vld [vmem:[%s291 + $0x6c] sm:$0xf]
        %v381 = vld [vmem:[%s291 + $0x70] sm:$0xf]
        %v382 = vld [vmem:[%s291 + $0x74] sm:$0xf]
        %v383 = vld [vmem:[%s291 + $0x78] sm:$0xf]
        %v384 = vld [vmem:[%s291 + $0x7c] sm:$0xf]
        %v385 = vld [vmem:[#allocation8] sm:$0xf]
        %v386 = vld [vmem:[#allocation8 + $0x4] sm:$0xf]
        %v387 = vld [vmem:[#allocation8 + $0x8] sm:$0xf]
        %v388 = vld [vmem:[#allocation8 + $0xc] sm:$0xf]
        %v389 = vld [vmem:[#allocation8 + $0x10] sm:$0xf]
        %v390 = vld [vmem:[#allocation8 + $0x14] sm:$0xf]
        %v391 = vld [vmem:[#allocation8 + $0x18] sm:$0xf]
        %v392 = vld [vmem:[#allocation8 + $0x1c] sm:$0xf]
        %v393 = vld [vmem:[#allocation8 + $0x20] sm:$0xf]
        %v394 = vld [vmem:[#allocation8 + $0x24] sm:$0xf]
        %v395 = vld [vmem:[#allocation8 + $0x28] sm:$0xf]
        %v396 = vld [vmem:[#allocation8 + $0x2c] sm:$0xf]
        %v397 = vld [vmem:[#allocation8 + $0x30] sm:$0xf]
        %v398 = vld [vmem:[#allocation8 + $0x34] sm:$0xf]
        %v399 = vld [vmem:[#allocation8 + $0x38] sm:$0xf]
        %v400 = vld [vmem:[#allocation8 + $0x3c] sm:$0xf]
        %v401 = vld [vmem:[%s2] sm:$0x1]
        %v403 = vlaneseq
        %v404 = vshrl.u32 %v403, 7
        %v405 = vsub.s32 0, %v404
        %v406 = vrot.slane %v401, %v405
        %v440 = vunpack.c.l.b16 %v353
        %v441 = vunpack.c.l.b16 %v354
        %v442 = vunpack.c.l.b16 %v355
        %v443 = vunpack.c.l.b16 %v356
        %v444 = vunpack.c.l.b16 %v357
        %v445 = vunpack.c.l.b16 %v358
        %v446 = vunpack.c.l.b16 %v359
        %v447 = vunpack.c.l.b16 %v360
        %v448 = vunpack.c.l.b16 %v361
        %v449 = vunpack.c.l.b16 %v362
        %v450 = vunpack.c.l.b16 %v363
        %v451 = vunpack.c.l.b16 %v364
        %v452 = vunpack.c.l.b16 %v365
        %v453 = vunpack.c.l.b16 %v366
        %v454 = vunpack.c.l.b16 %v367
        %v455 = vunpack.c.l.b16 %v368
        %v456 = vunpack.c.l.b16 %v369
        %v457 = vunpack.c.l.b16 %v370
        %v458 = vunpack.c.l.b16 %v371
        %v459 = vunpack.c.l.b16 %v372
        %v460 = vunpack.c.l.b16 %v373
        %v461 = vunpack.c.l.b16 %v374
        %v462 = vunpack.c.l.b16 %v375
        %v463 = vunpack.c.l.b16 %v376
        %v464 = vunpack.c.l.b16 %v377
        %v465 = vunpack.c.l.b16 %v378
        %v466 = vunpack.c.l.b16 %v379
        %v467 = vunpack.c.l.b16 %v380
        %v468 = vunpack.c.l.b16 %v381
        %v469 = vunpack.c.l.b16 %v382
        %v470 = vunpack.c.l.b16 %v383
        %v471 = vunpack.c.l.b16 %v384
        %v472 = vpack.c.b16 %v441, %v440
        %v473 = vpack.c.b16 %v443, %v442
        %v474 = vpack.c.b16 %v445, %v444
        %v475 = vpack.c.b16 %v447, %v446
        %v476 = vpack.c.b16 %v449, %v448
        %v477 = vpack.c.b16 %v451, %v450
        %v478 = vpack.c.b16 %v453, %v452
        %v479 = vpack.c.b16 %v455, %v454
        %v480 = vpack.c.b16 %v457, %v456
        %v481 = vpack.c.b16 %v459, %v458
        %v482 = vpack.c.b16 %v461, %v460
        %v483 = vpack.c.b16 %v463, %v462
        %v484 = vpack.c.b16 %v465, %v464
        %v485 = vpack.c.b16 %v467, %v466
        %v486 = vpack.c.b16 %v469, %v468
        %v487 = vpack.c.b16 %v471, %v470
        %v520 = vunpack.c.l.b16 %v385
        %v521 = vunpack.c.l.b16 %v386
        %v522 = vunpack.c.l.b16 %v387
        %v523 = vunpack.c.l.b16 %v388
        %v524 = vunpack.c.l.b16 %v389
        %v525 = vunpack.c.l.b16 %v390
        %v526 = vunpack.c.l.b16 %v391
        %v527 = vunpack.c.l.b16 %v392
        %v528 = vunpack.c.l.b16 %v393
        %v529 = vunpack.c.l.b16 %v394
        %v530 = vunpack.c.l.b16 %v395
        %v531 = vunpack.c.l.b16 %v396
        %v532 = vunpack.c.l.b16 %v397
        %v533 = vunpack.c.l.b16 %v398
        %v534 = vunpack.c.l.b16 %v399
        %v535 = vunpack.c.l.b16 %v400
        %v536 = vpack.c.b16 %v521, %v520
        %v537 = vpack.c.b16 %v523, %v522
        %v538 = vpack.c.b16 %v525, %v524
        %v539 = vpack.c.b16 %v527, %v526
        %v540 = vpack.c.b16 %v529, %v528
        %v541 = vpack.c.b16 %v531, %v530
        %v542 = vpack.c.b16 %v533, %v532
        %v543 = vpack.c.b16 %v535, %v534
        %552 = vmatprep.subr.bf16.mxu0 0
        %553 = vmatpush1.bf16.msra.mxu0 %v536
        %554 = vmatprep.subr.bf16.mxu0 0
        %555 = vmatpush1.bf16.msra.mxu0 %v537
        %556 = vmatprep.subr.bf16.mxu0 0
        %557 = vmatpush1.bf16.msra.mxu0 %v538
        %558 = vmatprep.subr.bf16.mxu0 0
        %559 = vmatpush1.bf16.msra.mxu0 %v539
        %560 = vmatprep.subr.bf16.mxu0 0
        %561 = vmatpush1.bf16.msra.mxu0 %v540
        %562 = vmatprep.subr.bf16.mxu0 0
        %563 = vmatpush1.bf16.msra.mxu0 %v541
        %564 = vmatprep.subr.bf16.mxu0 0
        %565 = vmatpush1.bf16.msra.mxu0 %v542
        %566 = vmatprep.subr.bf16.mxu0 0
        %567 = vmatpush1.bf16.msra.mxu0 %v543
        %568 = vmatprep.subr.bf16.mxu0 0
        %569 = vmatpush1.bf16.msra.mxu0 0
        %570 = vmatprep.subr.bf16.mxu0 0
        %571 = vmatpush1.bf16.msra.mxu0 0
        %572 = vmatprep.subr.bf16.mxu0 0
        %573 = vmatpush1.bf16.msra.mxu0 0
        %574 = vmatprep.subr.bf16.mxu0 0
        %575 = vmatpush1.bf16.msra.mxu0 0
        %576 = vmatprep.subr.bf16.mxu0 0
        %577 = vmatpush1.bf16.msra.mxu0 0
        %578 = vmatprep.subr.bf16.mxu0 0
        %579 = vmatpush1.bf16.msra.mxu0 0
        %580 = vmatprep.subr.bf16.mxu0 0
        %581 = vmatpush1.bf16.msra.mxu0 0
        %582 = vmatprep.subr.bf16.mxu0 0
        %583 = vmatpush1.bf16.msra.mxu0 0
        %584 = vmatprep.mubr.bf16.mxu0 0
        %585 = vmatmul.mubr.bf16.gmra.mrb[0].mxu0 %v472
        %v586 = vpop.f32.mrb[0].mxu0
        %v587 = vadd.f32 %v406, %v586
        %v588 = vpop.f32.mrb[0].mxu0
        %v589 = vpop.f32.mrb[0].mxu0
        %v590 = vadd.f32 %v406, %v589
        %v591 = vpop.f32.mrb[0].mxu0
        %592 = vmatprep.mubr.bf16.mxu0 0
        %593 = vmatmul.mubr.bf16.gmra.mrb[0].mxu0 %v473
        %v594 = vpop.f32.mrb[0].mxu0
        %v595 = vadd.f32 %v406, %v594
        %v596 = vpop.f32.mrb[0].mxu0
        %v597 = vpop.f32.mrb[0].mxu0
        %v598 = vadd.f32 %v406, %v597
        %v599 = vpop.f32.mrb[0].mxu0
        %600 = vmatprep.mubr.bf16.mxu0 0
        %601 = vmatmul.mubr.bf16.gmra.mrb[0].mxu0 %v474
        %v602 = vpop.f32.mrb[0].mxu0
        %v603 = vadd.f32 %v406, %v602
        %v604 = vpop.f32.mrb[0].mxu0
        %v605 = vpop.f32.mrb[0].mxu0
        %v606 = vadd.f32 %v406, %v605
        %v607 = vpop.f32.mrb[0].mxu0
        %608 = vmatprep.mubr.bf16.mxu0 0
        %609 = vmatmul.mubr.bf16.gmra.mrb[0].mxu0 %v475
        %v610 = vpop.f32.mrb[0].mxu0
        %v611 = vadd.f32 %v406, %v610
        %v612 = vpop.f32.mrb[0].mxu0
        %v613 = vpop.f32.mrb[0].mxu0
        %v614 = vadd.f32 %v406, %v613
        %v615 = vpop.f32.mrb[0].mxu0
        %616 = vmatprep.mubr.bf16.mxu0 0
        %617 = vmatmul.mubr.bf16.gmra.mrb[0].mxu0 %v476
        %v618 = vpop.f32.mrb[0].mxu0
        %v619 = vadd.f32 %v406, %v618
        %v620 = vpop.f32.mrb[0].mxu0
        %v621 = vpop.f32.mrb[0].mxu0
        %v622 = vadd.f32 %v406, %v621
        %v623 = vpop.f32.mrb[0].mxu0
        %624 = vmatprep.mubr.bf16.mxu0 0
        %625 = vmatmul.mubr.bf16.gmra.mrb[0].mxu0 %v477
        %v626 = vpop.f32.mrb[0].mxu0
        %v627 = vadd.f32 %v406, %v626
        %v628 = vpop.f32.mrb[0].mxu0
        %v629 = vpop.f32.mrb[0].mxu0
        %v630 = vadd.f32 %v406, %v629
        %v631 = vpop.f32.mrb[0].mxu0
        %632 = vmatprep.mubr.bf16.mxu0 0
        %633 = vmatmul.mubr.bf16.gmra.mrb[0].mxu0 %v478
        %v634 = vpop.f32.mrb[0].mxu0
        %v635 = vadd.f32 %v406, %v634
        %v636 = vpop.f32.mrb[0].mxu0
        %v637 = vpop.f32.mrb[0].mxu0
        %v638 = vadd.f32 %v406, %v637
        %v639 = vpop.f32.mrb[0].mxu0
        %640 = vmatprep.mubr.bf16.mxu0 0
        %641 = vmatmul.mubr.bf16.gmra.mrb[0].mxu0 %v479
        %v642 = vpop.f32.mrb[0].mxu0
        %v643 = vadd.f32 %v406, %v642
        %v644 = vpop.f32.mrb[0].mxu0
        %v645 = vpop.f32.mrb[0].mxu0
        %v646 = vadd.f32 %v406, %v645
        %v647 = vpop.f32.mrb[0].mxu0
        %648 = vmatprep.mubr.bf16.mxu0 0
        %649 = vmatmul.mubr.bf16.gmra.mrb[0].mxu0 %v480
        %v650 = vpop.f32.mrb[0].mxu0
        %v651 = vadd.f32 %v406, %v650
        %v652 = vpop.f32.mrb[0].mxu0
        %v653 = vpop.f32.mrb[0].mxu0
        %v654 = vadd.f32 %v406, %v653
        %v655 = vpop.f32.mrb[0].mxu0
        %656 = vmatprep.mubr.bf16.mxu0 0
        %657 = vmatmul.mubr.bf16.gmra.mrb[0].mxu0 %v481
        %v658 = vpop.f32.mrb[0].mxu0
        %v659 = vadd.f32 %v406, %v658
        %v660 = vpop.f32.mrb[0].mxu0
        %v661 = vpop.f32.mrb[0].mxu0
        %v662 = vadd.f32 %v406, %v661
        %v663 = vpop.f32.mrb[0].mxu0
        %664 = vmatprep.mubr.bf16.mxu0 0
        %665 = vmatmul.mubr.bf16.gmra.mrb[0].mxu0 %v482
        %v666 = vpop.f32.mrb[0].mxu0
        %v667 = vadd.f32 %v406, %v666
        %v668 = vpop.f32.mrb[0].mxu0
        %v669 = vpop.f32.mrb[0].mxu0
        %v670 = vadd.f32 %v406, %v669
        %v671 = vpop.f32.mrb[0].mxu0
        %672 = vmatprep.mubr.bf16.mxu0 0
        %673 = vmatmul.mubr.bf16.gmra.mrb[0].mxu0 %v483
        %v674 = vpop.f32.mrb[0].mxu0
        %v675 = vadd.f32 %v406, %v674
        %v676 = vpop.f32.mrb[0].mxu0
        %v677 = vpop.f32.mrb[0].mxu0
        %v678 = vadd.f32 %v406, %v677
        %v679 = vpop.f32.mrb[0].mxu0
        %680 = vmatprep.mubr.bf16.mxu0 0
        %681 = vmatmul.mubr.bf16.gmra.mrb[0].mxu0 %v484
        %v682 = vpop.f32.mrb[0].mxu0
        %v683 = vadd.f32 %v406, %v682
        %v684 = vpop.f32.mrb[0].mxu0
        %v685 = vpop.f32.mrb[0].mxu0
        %v686 = vadd.f32 %v406, %v685
        %v687 = vpop.f32.mrb[0].mxu0
        %688 = vmatprep.mubr.bf16.mxu0 0
        %689 = vmatmul.mubr.bf16.gmra.mrb[0].mxu0 %v485
        %v690 = vpop.f32.mrb[0].mxu0
        %v691 = vadd.f32 %v406, %v690
        %v692 = vpop.f32.mrb[0].mxu0
        %v693 = vpop.f32.mrb[0].mxu0
        %v694 = vadd.f32 %v406, %v693
        %v695 = vpop.f32.mrb[0].mxu0
        %696 = vmatprep.mubr.bf16.mxu0 0
        %697 = vmatmul.mubr.bf16.gmra.mrb[0].mxu0 %v486
        %v698 = vpop.f32.mrb[0].mxu0
        %v699 = vadd.f32 %v406, %v698
        %v700 = vpop.f32.mrb[0].mxu0
        %v701 = vpop.f32.mrb[0].mxu0
        %v702 = vadd.f32 %v406, %v701
        %v703 = vpop.f32.mrb[0].mxu0
        %704 = vmatprep.mubr.bf16.mxu0 0
        %705 = vmatmul.mubr.bf16.gmra.mrb[0].mxu0 %v487
        %v706 = vpop.f32.mrb[0].mxu0
        %v707 = vadd.f32 %v406, %v706
        %v708 = vpop.f32.mrb[0].mxu0
        %v709 = vpop.f32.mrb[0].mxu0
        %v710 = vadd.f32 %v406, %v709
        %v711 = vpop.f32.mrb[0].mxu0
        %712 = vdwg.mxu0
        %v713 = vpack.c.bf16 %v590, %v587
        %v714 = vpack.c.bf16 %v598, %v595
        %v715 = vpack.c.bf16 %v606, %v603
        %v716 = vpack.c.bf16 %v614, %v611
        %v717 = vpack.c.bf16 %v622, %v619
        %v718 = vpack.c.bf16 %v630, %v627
        %v719 = vpack.c.bf16 %v638, %v635
        %v720 = vpack.c.bf16 %v646, %v643
        %v721 = vpack.c.bf16 %v654, %v651
        %v722 = vpack.c.bf16 %v662, %v659
        %v723 = vpack.c.bf16 %v670, %v667
        %v724 = vpack.c.bf16 %v678, %v675
        %v725 = vpack.c.bf16 %v686, %v683
        %v726 = vpack.c.bf16 %v694, %v691
        %v727 = vpack.c.bf16 %v702, %v699
        %v728 = vpack.c.bf16 %v710, %v707
        %v729 = vld [vmem:[%s304] sm:$0xf]
        %v730 = vld [vmem:[%s304 + $0x4] sm:$0xf]
        %v731 = vld [vmem:[%s304 + $0x8] sm:$0xf]
        %v732 = vld [vmem:[%s304 + $0xc] sm:$0xf]
        %v733 = vld [vmem:[%s304 + $0x10] sm:$0xf]
        %v734 = vld [vmem:[%s304 + $0x14] sm:$0xf]
        %v735 = vld [vmem:[%s304 + $0x18] sm:$0xf]
        %v736 = vld [vmem:[%s304 + $0x1c] sm:$0xf]
        %v737 = vld [vmem:[%s304 + $0x20] sm:$0xf]
        %v738 = vld [vmem:[%s304 + $0x24] sm:$0xf]
        %v739 = vld [vmem:[%s304 + $0x28] sm:$0xf]
        %v740 = vld [vmem:[%s304 + $0x2c] sm:$0xf]
        %v741 = vld [vmem:[%s304 + $0x30] sm:$0xf]
        %v742 = vld [vmem:[%s304 + $0x34] sm:$0xf]
        %v743 = vld [vmem:[%s304 + $0x38] sm:$0xf]
        %v744 = vld [vmem:[%s304 + $0x3c] sm:$0xf]
        %v745 = vld [vmem:[%s304 + $0x40] sm:$0xf]
        %v746 = vld [vmem:[%s304 + $0x44] sm:$0xf]
        %v747 = vld [vmem:[%s304 + $0x48] sm:$0xf]
        %v748 = vld [vmem:[%s304 + $0x4c] sm:$0xf]
        %v749 = vld [vmem:[%s304 + $0x50] sm:$0xf]
        %v750 = vld [vmem:[%s304 + $0x54] sm:$0xf]
        %v751 = vld [vmem:[%s304 + $0x58] sm:$0xf]
        %v752 = vld [vmem:[%s304 + $0x5c] sm:$0xf]
        %v753 = vld [vmem:[%s304 + $0x60] sm:$0xf]
        %v754 = vld [vmem:[%s304 + $0x64] sm:$0xf]
        %v755 = vld [vmem:[%s304 + $0x68] sm:$0xf]
        %v756 = vld [vmem:[%s304 + $0x6c] sm:$0xf]
        %v757 = vld [vmem:[%s304 + $0x70] sm:$0xf]
        %v758 = vld [vmem:[%s304 + $0x74] sm:$0xf]
        %v759 = vld [vmem:[%s304 + $0x78] sm:$0xf]
        %v760 = vld [vmem:[%s304 + $0x7c] sm:$0xf]
        %v793 = vunpack.c.l.b16 %v729
        %v794 = vunpack.c.l.b16 %v730
        %v795 = vunpack.c.l.b16 %v731
        %v796 = vunpack.c.l.b16 %v732
        %v797 = vunpack.c.l.b16 %v733
        %v798 = vunpack.c.l.b16 %v734
        %v799 = vunpack.c.l.b16 %v735
        %v800 = vunpack.c.l.b16 %v736
        %v801 = vunpack.c.l.b16 %v737
        %v802 = vunpack.c.l.b16 %v738
        %v803 = vunpack.c.l.b16 %v739
        %v804 = vunpack.c.l.b16 %v740
        %v805 = vunpack.c.l.b16 %v741
        %v806 = vunpack.c.l.b16 %v742
        %v807 = vunpack.c.l.b16 %v743
        %v808 = vunpack.c.l.b16 %v744
        %v809 = vunpack.c.l.b16 %v745
        %v810 = vunpack.c.l.b16 %v746
        %v811 = vunpack.c.l.b16 %v747
        %v812 = vunpack.c.l.b16 %v748
        %v813 = vunpack.c.l.b16 %v749
        %v814 = vunpack.c.l.b16 %v750
        %v815 = vunpack.c.l.b16 %v751
        %v816 = vunpack.c.l.b16 %v752
        %v817 = vunpack.c.l.b16 %v753
        %v818 = vunpack.c.l.b16 %v754
        %v819 = vunpack.c.l.b16 %v755
        %v820 = vunpack.c.l.b16 %v756
        %v821 = vunpack.c.l.b16 %v757
        %v822 = vunpack.c.l.b16 %v758
        %v823 = vunpack.c.l.b16 %v759
        %v824 = vunpack.c.l.b16 %v760
        %v825 = vpack.c.b16 %v794, %v793
        %v826 = vpack.c.b16 %v796, %v795
        %v827 = vpack.c.b16 %v798, %v797
        %v828 = vpack.c.b16 %v800, %v799
        %v829 = vpack.c.b16 %v802, %v801
        %v830 = vpack.c.b16 %v804, %v803
        %v831 = vpack.c.b16 %v806, %v805
        %v832 = vpack.c.b16 %v808, %v807
        %v833 = vpack.c.b16 %v810, %v809
        %v834 = vpack.c.b16 %v812, %v811
        %v835 = vpack.c.b16 %v814, %v813
        %v836 = vpack.c.b16 %v816, %v815
        %v837 = vpack.c.b16 %v818, %v817
        %v838 = vpack.c.b16 %v820, %v819
        %v839 = vpack.c.b16 %v822, %v821
        %v840 = vpack.c.b16 %v824, %v823
        %857 = vmatprep.subr.bf16.mxu0 0
        %858 = vmatpush1.bf16.xpose.msra.mxu0 %v825
        %859 = vmatprep.subr.bf16.mxu0 0
        %860 = vmatpush1.bf16.xpose.msra.mxu0 %v826
        %861 = vmatprep.subr.bf16.mxu0 0
        %862 = vmatpush1.bf16.xpose.msra.mxu0 %v827
        %863 = vmatprep.subr.bf16.mxu0 0
        %864 = vmatpush1.bf16.xpose.msra.mxu0 %v828
        %865 = vmatprep.subr.bf16.mxu0 0
        %866 = vmatpush1.bf16.xpose.msra.mxu0 %v829
        %867 = vmatprep.subr.bf16.mxu0 0
        %868 = vmatpush1.bf16.xpose.msra.mxu0 %v830
        %869 = vmatprep.subr.bf16.mxu0 0
        %870 = vmatpush1.bf16.xpose.msra.mxu0 %v831
        %871 = vmatprep.subr.bf16.mxu0 0
        %872 = vmatpush1.bf16.xpose.msra.mxu0 %v832
        %873 = vmatprep.subr.bf16.mxu0 0
        %874 = vmatpush1.bf16.xpose.msra.mxu0 %v833
        %875 = vmatprep.subr.bf16.mxu0 0
        %876 = vmatpush1.bf16.xpose.msra.mxu0 %v834
        %877 = vmatprep.subr.bf16.mxu0 0
        %878 = vmatpush1.bf16.xpose.msra.mxu0 %v835
        %879 = vmatprep.subr.bf16.mxu0 0
        %880 = vmatpush1.bf16.xpose.msra.mxu0 %v836
        %881 = vmatprep.subr.bf16.mxu0 0
        %882 = vmatpush1.bf16.xpose.msra.mxu0 %v837
        %883 = vmatprep.subr.bf16.mxu0 0
        %884 = vmatpush1.bf16.xpose.msra.mxu0 %v838
        %885 = vmatprep.subr.bf16.mxu0 0
        %886 = vmatpush1.bf16.xpose.msra.mxu0 %v839
        %887 = vmatprep.subr.bf16.mxu0 0
        %888 = vmatpush1.bf16.xpose.msra.mxu0 %v840
        %889 = vmatprep.mubr.bf16.mxu0 0
        %890 = vmatmul.mubr.bf16.gmra.mrb[0].mxu0 %v713
        %v891 = vpop.f32.mrb[0].mxu0
        %v892 = vadd.f32 0.0, %v891
        %v893 = vpop.f32.mrb[0].mxu0
        %v894 = vadd.f32 0.0, %v893
        %v895 = vpop.f32.mrb[0].mxu0
        %v896 = vadd.f32 0.0, %v895
        %v897 = vpop.f32.mrb[0].mxu0
        %v898 = vadd.f32 0.0, %v897
        %899 = vmatprep.mubr.bf16.mxu0 0
        %900 = vmatmul.mubr.bf16.gmra.mrb[0].mxu0 %v714
        %v901 = vpop.f32.mrb[0].mxu0
        %v902 = vadd.f32 0.0, %v901
        %v903 = vpop.f32.mrb[0].mxu0
        %v904 = vadd.f32 0.0, %v903
        %v905 = vpop.f32.mrb[0].mxu0
        %v906 = vadd.f32 0.0, %v905
        %v907 = vpop.f32.mrb[0].mxu0
        %v908 = vadd.f32 0.0, %v907
        %909 = vmatprep.mubr.bf16.mxu0 0
        %910 = vmatmul.mubr.bf16.gmra.mrb[0].mxu0 %v715
        %v911 = vpop.f32.mrb[0].mxu0
        %v912 = vadd.f32 0.0, %v911
        %v913 = vpop.f32.mrb[0].mxu0
        %v914 = vadd.f32 0.0, %v913
        %v915 = vpop.f32.mrb[0].mxu0
        %v916 = vadd.f32 0.0, %v915
        %v917 = vpop.f32.mrb[0].mxu0
        %v918 = vadd.f32 0.0, %v917
        %919 = vmatprep.mubr.bf16.mxu0 0
        %920 = vmatmul.mubr.bf16.gmra.mrb[0].mxu0 %v716
        %v921 = vpop.f32.mrb[0].mxu0
        %v922 = vadd.f32 0.0, %v921
        %v923 = vpop.f32.mrb[0].mxu0
        %v924 = vadd.f32 0.0, %v923
        %v925 = vpop.f32.mrb[0].mxu0
        %v926 = vadd.f32 0.0, %v925
        %v927 = vpop.f32.mrb[0].mxu0
        %v928 = vadd.f32 0.0, %v927
        %929 = vmatprep.mubr.bf16.mxu0 0
        %930 = vmatmul.mubr.bf16.gmra.mrb[0].mxu0 %v717
        %v931 = vpop.f32.mrb[0].mxu0
        %v932 = vadd.f32 0.0, %v931
        %v933 = vpop.f32.mrb[0].mxu0
        %v934 = vadd.f32 0.0, %v933
        %v935 = vpop.f32.mrb[0].mxu0
        %v936 = vadd.f32 0.0, %v935
        %v937 = vpop.f32.mrb[0].mxu0
        %v938 = vadd.f32 0.0, %v937
        %939 = vmatprep.mubr.bf16.mxu0 0
        %940 = vmatmul.mubr.bf16.gmra.mrb[0].mxu0 %v718
        %v941 = vpop.f32.mrb[0].mxu0
        %v942 = vadd.f32 0.0, %v941
        %v943 = vpop.f32.mrb[0].mxu0
        %v944 = vadd.f32 0.0, %v943
        %v945 = vpop.f32.mrb[0].mxu0
        %v946 = vadd.f32 0.0, %v945
        %v947 = vpop.f32.mrb[0].mxu0
        %v948 = vadd.f32 0.0, %v947
        %949 = vmatprep.mubr.bf16.mxu0 0
        %950 = vmatmul.mubr.bf16.gmra.mrb[0].mxu0 %v719
        %v951 = vpop.f32.mrb[0].mxu0
        %v952 = vadd.f32 0.0, %v951
        %v953 = vpop.f32.mrb[0].mxu0
        %v954 = vadd.f32 0.0, %v953
        %v955 = vpop.f32.mrb[0].mxu0
        %v956 = vadd.f32 0.0, %v955
        %v957 = vpop.f32.mrb[0].mxu0
        %v958 = vadd.f32 0.0, %v957
        %959 = vmatprep.mubr.bf16.mxu0 0
        %960 = vmatmul.mubr.bf16.gmra.mrb[0].mxu0 %v720
        %v961 = vpop.f32.mrb[0].mxu0
        %v962 = vadd.f32 0.0, %v961
        %v963 = vpop.f32.mrb[0].mxu0
        %v964 = vadd.f32 0.0, %v963
        %v965 = vpop.f32.mrb[0].mxu0
        %v966 = vadd.f32 0.0, %v965
        %v967 = vpop.f32.mrb[0].mxu0
        %v968 = vadd.f32 0.0, %v967
        %969 = vmatprep.mubr.bf16.mxu0 0
        %970 = vmatmul.mubr.bf16.gmra.mrb[0].mxu0 %v721
        %v971 = vpop.f32.mrb[0].mxu0
        %v972 = vadd.f32 0.0, %v971
        %v973 = vpop.f32.mrb[0].mxu0
        %v974 = vadd.f32 0.0, %v973
        %v975 = vpop.f32.mrb[0].mxu0
        %v976 = vadd.f32 0.0, %v975
        %v977 = vpop.f32.mrb[0].mxu0
        %v978 = vadd.f32 0.0, %v977
        %979 = vmatprep.mubr.bf16.mxu0 0
        %980 = vmatmul.mubr.bf16.gmra.mrb[0].mxu0 %v722
        %v981 = vpop.f32.mrb[0].mxu0
        %v982 = vadd.f32 0.0, %v981
        %v983 = vpop.f32.mrb[0].mxu0
        %v984 = vadd.f32 0.0, %v983
        %v985 = vpop.f32.mrb[0].mxu0
        %v986 = vadd.f32 0.0, %v985
        %v987 = vpop.f32.mrb[0].mxu0
        %v988 = vadd.f32 0.0, %v987
        %989 = vmatprep.mubr.bf16.mxu0 0
        %990 = vmatmul.mubr.bf16.gmra.mrb[0].mxu0 %v723
        %v991 = vpop.f32.mrb[0].mxu0
        %v992 = vadd.f32 0.0, %v991
        %v993 = vpop.f32.mrb[0].mxu0
        %v994 = vadd.f32 0.0, %v993
        %v995 = vpop.f32.mrb[0].mxu0
        %v996 = vadd.f32 0.0, %v995
        %v997 = vpop.f32.mrb[0].mxu0
        %v998 = vadd.f32 0.0, %v997
        %999 = vmatprep.mubr.bf16.mxu0 0
        %1000 = vmatmul.mubr.bf16.gmra.mrb[0].mxu0 %v724
        %v1001 = vpop.f32.mrb[0].mxu0
        %v1002 = vadd.f32 0.0, %v1001
        %v1003 = vpop.f32.mrb[0].mxu0
        %v1004 = vadd.f32 0.0, %v1003
        %v1005 = vpop.f32.mrb[0].mxu0
        %v1006 = vadd.f32 0.0, %v1005
        %v1007 = vpop.f32.mrb[0].mxu0
        %v1008 = vadd.f32 0.0, %v1007
        %1009 = vmatprep.mubr.bf16.mxu0 0
        %1010 = vmatmul.mubr.bf16.gmra.mrb[0].mxu0 %v725
        %v1011 = vpop.f32.mrb[0].mxu0
        %v1012 = vadd.f32 0.0, %v1011
        %v1013 = vpop.f32.mrb[0].mxu0
        %v1014 = vadd.f32 0.0, %v1013
        %v1015 = vpop.f32.mrb[0].mxu0
        %v1016 = vadd.f32 0.0, %v1015
        %v1017 = vpop.f32.mrb[0].mxu0
        %v1018 = vadd.f32 0.0, %v1017
        %1019 = vmatprep.mubr.bf16.mxu0 0
        %1020 = vmatmul.mubr.bf16.gmra.mrb[0].mxu0 %v726
        %v1021 = vpop.f32.mrb[0].mxu0
        %v1022 = vadd.f32 0.0, %v1021
        %v1023 = vpop.f32.mrb[0].mxu0
        %v1024 = vadd.f32 0.0, %v1023
        %v1025 = vpop.f32.mrb[0].mxu0
        %v1026 = vadd.f32 0.0, %v1025
        %v1027 = vpop.f32.mrb[0].mxu0
        %v1028 = vadd.f32 0.0, %v1027
        %1029 = vmatprep.mubr.bf16.mxu0 0
        %1030 = vmatmul.mubr.bf16.gmra.mrb[0].mxu0 %v727
        %v1031 = vpop.f32.mrb[0].mxu0
        %v1032 = vadd.f32 0.0, %v1031
        %v1033 = vpop.f32.mrb[0].mxu0
        %v1034 = vadd.f32 0.0, %v1033
        %v1035 = vpop.f32.mrb[0].mxu0
        %v1036 = vadd.f32 0.0, %v1035
        %v1037 = vpop.f32.mrb[0].mxu0
        %v1038 = vadd.f32 0.0, %v1037
        %1039 = vmatprep.mubr.bf16.mxu0 0
        %1040 = vmatmul.mubr.bf16.gmra.mrb[0].mxu0 %v728
        %v1041 = vpop.f32.mrb[0].mxu0
        %v1042 = vadd.f32 0.0, %v1041
        %v1043 = vpop.f32.mrb[0].mxu0
        %v1044 = vadd.f32 0.0, %v1043
        %v1045 = vpop.f32.mrb[0].mxu0
        %v1046 = vadd.f32 0.0, %v1045
        %v1047 = vpop.f32.mrb[0].mxu0
        %v1048 = vadd.f32 0.0, %v1047
        %1049 = vdwg.mxu0
        %v1050 = vmax.f32 %v892, %v894
        %1051 = vmax.xlane.f32.xlu0 %v1050
        %v1052 = vpop.xlane.xlu0 %1051
        %v1053 = vmax.f32 %v896, %v898
        %1054 = vmax.xlane.f32.xlu0 %v1053
        %v1055 = vpop.xlane.xlu0 %1054
        %v1056 = vmax.f32 %v902, %v904
        %1057 = vmax.xlane.f32.xlu0 %v1056
        %v1058 = vpop.xlane.xlu0 %1057
        %v1059 = vmax.f32 %v906, %v908
        %1060 = vmax.xlane.f32.xlu0 %v1059
        %v1061 = vpop.xlane.xlu0 %1060
        %v1062 = vmax.f32 %v912, %v914
        %1063 = vmax.xlane.f32.xlu0 %v1062
        %v1064 = vpop.xlane.xlu0 %1063
        %v1065 = vmax.f32 %v916, %v918
        %1066 = vmax.xlane.f32.xlu0 %v1065
        %v1067 = vpop.xlane.xlu0 %1066
        %v1068 = vmax.f32 %v922, %v924
        %1069 = vmax.xlane.f32.xlu0 %v1068
        %v1070 = vpop.xlane.xlu0 %1069
        %v1071 = vmax.f32 %v926, %v928
        %1072 = vmax.xlane.f32.xlu0 %v1071
        %v1073 = vpop.xlane.xlu0 %1072
        %v1074 = vmax.f32 %v932, %v934
        %1075 = vmax.xlane.f32.xlu0 %v1074
        %v1076 = vpop.xlane.xlu0 %1075
        %v1077 = vmax.f32 %v936, %v938
        %1078 = vmax.xlane.f32.xlu0 %v1077
        %v1079 = vpop.xlane.xlu0 %1078
        %v1080 = vmax.f32 %v942, %v944
        %1081 = vmax.xlane.f32.xlu0 %v1080
        %v1082 = vpop.xlane.xlu0 %1081
        %v1083 = vmax.f32 %v946, %v948
        %1084 = vmax.xlane.f32.xlu0 %v1083
        %v1085 = vpop.xlane.xlu0 %1084
        %v1086 = vmax.f32 %v952, %v954
        %1087 = vmax.xlane.f32.xlu0 %v1086
        %v1088 = vpop.xlane.xlu0 %1087
        %v1089 = vmax.f32 %v956, %v958
        %1090 = vmax.xlane.f32.xlu0 %v1089
        %v1091 = vpop.xlane.xlu0 %1090
        %v1092 = vmax.f32 %v962, %v964
        %1093 = vmax.xlane.f32.xlu0 %v1092
        %v1094 = vpop.xlane.xlu0 %1093
        %v1095 = vmax.f32 %v966, %v968
        %1096 = vmax.xlane.f32.xlu0 %v1095
        %v1097 = vpop.xlane.xlu0 %1096
        %v1098 = vmax.f32 %v972, %v974
        %1099 = vmax.xlane.f32.xlu0 %v1098
        %v1100 = vpop.xlane.xlu0 %1099
        %v1101 = vmax.f32 %v976, %v978
        %1102 = vmax.xlane.f32.xlu0 %v1101
        %v1103 = vpop.xlane.xlu0 %1102
        %v1104 = vmax.f32 %v982, %v984
        %1105 = vmax.xlane.f32.xlu0 %v1104
        %v1106 = vpop.xlane.xlu0 %1105
        %v1107 = vmax.f32 %v986, %v988
        %1108 = vmax.xlane.f32.xlu0 %v1107
        %v1109 = vpop.xlane.xlu0 %1108
        %v1110 = vmax.f32 %v992, %v994
        %1111 = vmax.xlane.f32.xlu0 %v1110
        %v1112 = vpop.xlane.xlu0 %1111
        %v1113 = vmax.f32 %v996, %v998
        %1114 = vmax.xlane.f32.xlu0 %v1113
        %v1115 = vpop.xlane.xlu0 %1114
        %v1116 = vmax.f32 %v1002, %v1004
        %1117 = vmax.xlane.f32.xlu0 %v1116
        %v1118 = vpop.xlane.xlu0 %1117
        %v1119 = vmax.f32 %v1006, %v1008
        %1120 = vmax.xlane.f32.xlu0 %v1119
        %v1121 = vpop.xlane.xlu0 %1120
        %v1122 = vmax.f32 %v1012, %v1014
        %1123 = vmax.xlane.f32.xlu0 %v1122
        %v1124 = vpop.xlane.xlu0 %1123
        %v1125 = vmax.f32 %v1016, %v1018
        %1126 = vmax.xlane.f32.xlu0 %v1125
        %v1127 = vpop.xlane.xlu0 %1126
        %v1128 = vmax.f32 %v1022, %v1024
        %1129 = vmax.xlane.f32.xlu0 %v1128
        %v1130 = vpop.xlane.xlu0 %1129
        %v1131 = vmax.f32 %v1026, %v1028
        %1132 = vmax.xlane.f32.xlu0 %v1131
        %v1133 = vpop.xlane.xlu0 %1132
        %v1134 = vmax.f32 %v1032, %v1034
        %1135 = vmax.xlane.f32.xlu0 %v1134
        %v1136 = vpop.xlane.xlu0 %1135
        %v1137 = vmax.f32 %v1036, %v1038
        %1138 = vmax.xlane.f32.xlu0 %v1137
        %v1139 = vpop.xlane.xlu0 %1138
        %v1140 = vmax.f32 %v1042, %v1044
        %1141 = vmax.xlane.f32.xlu0 %v1140
        %v1142 = vpop.xlane.xlu0 %1141
        %v1143 = vmax.f32 %v1046, %v1048
        %1144 = vmax.xlane.f32.xlu0 %v1143
        %v1145 = vpop.xlane.xlu0 %1144
        %v1146 = vsub.f32 %v892, %v1052
        %v1147 = vsub.f32 %v894, %v1052
        %v1148 = vsub.f32 %v896, %v1055
        %v1149 = vsub.f32 %v898, %v1055
        %v1150 = vsub.f32 %v902, %v1058
        %v1151 = vsub.f32 %v904, %v1058
        %v1152 = vsub.f32 %v906, %v1061
        %v1153 = vsub.f32 %v908, %v1061
        %v1154 = vsub.f32 %v912, %v1064
        %v1155 = vsub.f32 %v914, %v1064
        %v1156 = vsub.f32 %v916, %v1067
        %v1157 = vsub.f32 %v918, %v1067
        %v1158 = vsub.f32 %v922, %v1070
        %v1159 = vsub.f32 %v924, %v1070
        %v1160 = vsub.f32 %v926, %v1073
        %v1161 = vsub.f32 %v928, %v1073
        %v1162 = vsub.f32 %v932, %v1076
        %v1163 = vsub.f32 %v934, %v1076
        %v1164 = vsub.f32 %v936, %v1079
        %v1165 = vsub.f32 %v938, %v1079
        %v1166 = vsub.f32 %v942, %v1082
        %v1167 = vsub.f32 %v944, %v1082
        %v1168 = vsub.f32 %v946, %v1085
        %v1169 = vsub.f32 %v948, %v1085
        %v1170 = vsub.f32 %v952, %v1088
        %v1171 = vsub.f32 %v954, %v1088
        %v1172 = vsub.f32 %v956, %v1091
        %v1173 = vsub.f32 %v958, %v1091
        %v1174 = vsub.f32 %v962, %v1094
        %v1175 = vsub.f32 %v964, %v1094
        %v1176 = vsub.f32 %v966, %v1097
        %v1177 = vsub.f32 %v968, %v1097
        %v1178 = vsub.f32 %v972, %v1100
        %v1179 = vsub.f32 %v974, %v1100
        %v1180 = vsub.f32 %v976, %v1103
        %v1181 = vsub.f32 %v978, %v1103
        %v1182 = vsub.f32 %v982, %v1106
        %v1183 = vsub.f32 %v984, %v1106
        %v1184 = vsub.f32 %v986, %v1109
        %v1185 = vsub.f32 %v988, %v1109
        %v1186 = vsub.f32 %v992, %v1112
        %v1187 = vsub.f32 %v994, %v1112
        %v1188 = vsub.f32 %v996, %v1115
        %v1189 = vsub.f32 %v998, %v1115
        %v1190 = vsub.f32 %v1002, %v1118
        %v1191 = vsub.f32 %v1004, %v1118
        %v1192 = vsub.f32 %v1006, %v1121
        %v1193 = vsub.f32 %v1008, %v1121
        %v1194 = vsub.f32 %v1012, %v1124
        %v1195 = vsub.f32 %v1014, %v1124
        %v1196 = vsub.f32 %v1016, %v1127
        %v1197 = vsub.f32 %v1018, %v1127
        %v1198 = vsub.f32 %v1022, %v1130
        %v1199 = vsub.f32 %v1024, %v1130
        %v1200 = vsub.f32 %v1026, %v1133
        %v1201 = vsub.f32 %v1028, %v1133
        %v1202 = vsub.f32 %v1032, %v1136
        %v1203 = vsub.f32 %v1034, %v1136
        %v1204 = vsub.f32 %v1036, %v1139
        %v1205 = vsub.f32 %v1038, %v1139
        %v1206 = vsub.f32 %v1042, %v1142
        %v1207 = vsub.f32 %v1044, %v1142
        %v1208 = vsub.f32 %v1046, %v1145
        %v1209 = vsub.f32 %v1048, %v1145
        %v1210 = vmul.f32 %v1146, 1.442695
        %v1211 = vpow.pop %v1210
        %v1212 = vmul.f32 %v1147, 1.442695
        %v1213 = vpow.pop %v1212
        %v1214 = vmul.f32 %v1148, 1.442695
        %v1215 = vpow.pop %v1214
        %v1216 = vmul.f32 %v1149, 1.442695
        %v1217 = vpow.pop %v1216
        %v1218 = vmul.f32 %v1150, 1.442695
        %v1219 = vpow.pop %v1218
        %v1220 = vmul.f32 %v1151, 1.442695
        %v1221 = vpow.pop %v1220
        %v1222 = vmul.f32 %v1152, 1.442695
        %v1223 = vpow.pop %v1222
        %v1224 = vmul.f32 %v1153, 1.442695
        %v1225 = vpow.pop %v1224
        %v1226 = vmul.f32 %v1154, 1.442695
        %v1227 = vpow.pop %v1226
        %v1228 = vmul.f32 %v1155, 1.442695
        %v1229 = vpow.pop %v1228
        %v1230 = vmul.f32 %v1156, 1.442695
        %v1231 = vpow.pop %v1230
        %v1232 = vmul.f32 %v1157, 1.442695
        %v1233 = vpow.pop %v1232
        %v1234 = vmul.f32 %v1158, 1.442695
        %v1235 = vpow.pop %v1234
        %v1236 = vmul.f32 %v1159, 1.442695
        %v1237 = vpow.pop %v1236
        %v1238 = vmul.f32 %v1160, 1.442695
        %v1239 = vpow.pop %v1238
        %v1240 = vmul.f32 %v1161, 1.442695
        %v1241 = vpow.pop %v1240
        %v1242 = vmul.f32 %v1162, 1.442695
        %v1243 = vpow.pop %v1242
        %v1244 = vmul.f32 %v1163, 1.442695
        %v1245 = vpow.pop %v1244
        %v1246 = vmul.f32 %v1164, 1.442695
        %v1247 = vpow.pop %v1246
        %v1248 = vmul.f32 %v1165, 1.442695
        %v1249 = vpow.pop %v1248
        %v1250 = vmul.f32 %v1166, 1.442695
        %v1251 = vpow.pop %v1250
        %v1252 = vmul.f32 %v1167, 1.442695
        %v1253 = vpow.pop %v1252
        %v1254 = vmul.f32 %v1168, 1.442695
        %v1255 = vpow.pop %v1254
        %v1256 = vmul.f32 %v1169, 1.442695
        %v1257 = vpow.pop %v1256
        %v1258 = vmul.f32 %v1170, 1.442695
        %v1259 = vpow.pop %v1258
        %v1260 = vmul.f32 %v1171, 1.442695
        %v1261 = vpow.pop %v1260
        %v1262 = vmul.f32 %v1172, 1.442695
        %v1263 = vpow.pop %v1262
        %v1264 = vmul.f32 %v1173, 1.442695
        %v1265 = vpow.pop %v1264
        %v1266 = vmul.f32 %v1174, 1.442695
        %v1267 = vpow.pop %v1266
        %v1268 = vmul.f32 %v1175, 1.442695
        %v1269 = vpow.pop %v1268
        %v1270 = vmul.f32 %v1176, 1.442695
        %v1271 = vpow.pop %v1270
        %v1272 = vmul.f32 %v1177, 1.442695
        %v1273 = vpow.pop %v1272
        %v1274 = vmul.f32 %v1178, 1.442695
        %v1275 = vpow.pop %v1274
        %v1276 = vmul.f32 %v1179, 1.442695
        %v1277 = vpow.pop %v1276
        %v1278 = vmul.f32 %v1180, 1.442695
        %v1279 = vpow.pop %v1278
        %v1280 = vmul.f32 %v1181, 1.442695
        %v1281 = vpow.pop %v1280
        %v1282 = vmul.f32 %v1182, 1.442695
        %v1283 = vpow.pop %v1282
        %v1284 = vmul.f32 %v1183, 1.442695
        %v1285 = vpow.pop %v1284
        %v1286 = vmul.f32 %v1184, 1.442695
        %v1287 = vpow.pop %v1286
        %v1288 = vmul.f32 %v1185, 1.442695
        %v1289 = vpow.pop %v1288
        %v1290 = vmul.f32 %v1186, 1.442695
        %v1291 = vpow.pop %v1290
        %v1292 = vmul.f32 %v1187, 1.442695
        %v1293 = vpow.pop %v1292
        %v1294 = vmul.f32 %v1188, 1.442695
        %v1295 = vpow.pop %v1294
        %v1296 = vmul.f32 %v1189, 1.442695
        %v1297 = vpow.pop %v1296
        %v1298 = vmul.f32 %v1190, 1.442695
        %v1299 = vpow.pop %v1298
        %v1300 = vmul.f32 %v1191, 1.442695
        %v1301 = vpow.pop %v1300
        %v1302 = vmul.f32 %v1192, 1.442695
        %v1303 = vpow.pop %v1302
        %v1304 = vmul.f32 %v1193, 1.442695
        %v1305 = vpow.pop %v1304
        %v1306 = vmul.f32 %v1194, 1.442695
        %v1307 = vpow.pop %v1306
        %v1308 = vmul.f32 %v1195, 1.442695
        %v1309 = vpow.pop %v1308
        %v1310 = vmul.f32 %v1196, 1.442695
        %v1311 = vpow.pop %v1310
        %v1312 = vmul.f32 %v1197, 1.442695
        %v1313 = vpow.pop %v1312
        %v1314 = vmul.f32 %v1198, 1.442695
        %v1315 = vpow.pop %v1314
        %v1316 = vmul.f32 %v1199, 1.442695
        %v1317 = vpow.pop %v1316
        %v1318 = vmul.f32 %v1200, 1.442695
        %v1319 = vpow.pop %v1318
        %v1320 = vmul.f32 %v1201, 1.442695
        %v1321 = vpow.pop %v1320
        %v1322 = vmul.f32 %v1202, 1.442695
        %v1323 = vpow.pop %v1322
        %v1324 = vmul.f32 %v1203, 1.442695
        %v1325 = vpow.pop %v1324
        %v1326 = vmul.f32 %v1204, 1.442695
        %v1327 = vpow.pop %v1326
        %v1328 = vmul.f32 %v1205, 1.442695
        %v1329 = vpow.pop %v1328
        %v1330 = vmul.f32 %v1206, 1.442695
        %v1331 = vpow.pop %v1330
        %v1332 = vmul.f32 %v1207, 1.442695
        %v1333 = vpow.pop %v1332
        %v1334 = vmul.f32 %v1208, 1.442695
        %v1335 = vpow.pop %v1334
        %v1336 = vmul.f32 %v1209, 1.442695
        %v1337 = vpow.pop %v1336
        %v1338 = vadd.f32 %v1211, %v1213
        %1339 = vadd.xlane.f32.xlu0 %v1338
        %v1340 = vpop.xlane.xlu0 %1339
        %v1341 = vadd.f32 %v1215, %v1217
        %1342 = vadd.xlane.f32.xlu0 %v1341
        %v1343 = vpop.xlane.xlu0 %1342
        %v1344 = vadd.f32 %v1219, %v1221
        %1345 = vadd.xlane.f32.xlu0 %v1344
        %v1346 = vpop.xlane.xlu0 %1345
        %v1347 = vadd.f32 %v1223, %v1225
        %1348 = vadd.xlane.f32.xlu0 %v1347
        %v1349 = vpop.xlane.xlu0 %1348
        %v1350 = vadd.f32 %v1227, %v1229
        %1351 = vadd.xlane.f32.xlu0 %v1350
        %v1352 = vpop.xlane.xlu0 %1351
        %v1353 = vadd.f32 %v1231, %v1233
        %1354 = vadd.xlane.f32.xlu0 %v1353
        %v1355 = vpop.xlane.xlu0 %1354
        %v1356 = vadd.f32 %v1235, %v1237
        %1357 = vadd.xlane.f32.xlu0 %v1356
        %v1358 = vpop.xlane.xlu0 %1357
        %v1359 = vadd.f32 %v1239, %v1241
        %1360 = vadd.xlane.f32.xlu0 %v1359
        %v1361 = vpop.xlane.xlu0 %1360
        %v1362 = vadd.f32 %v1243, %v1245
        %1363 = vadd.xlane.f32.xlu0 %v1362
        %v1364 = vpop.xlane.xlu0 %1363
        %v1365 = vadd.f32 %v1247, %v1249
        %1366 = vadd.xlane.f32.xlu0 %v1365
        %v1367 = vpop.xlane.xlu0 %1366
        %v1368 = vadd.f32 %v1251, %v1253
        %1369 = vadd.xlane.f32.xlu0 %v1368
        %v1370 = vpop.xlane.xlu0 %1369
        %v1371 = vadd.f32 %v1255, %v1257
        %1372 = vadd.xlane.f32.xlu0 %v1371
        %v1373 = vpop.xlane.xlu0 %1372
        %v1374 = vadd.f32 %v1259, %v1261
        %1375 = vadd.xlane.f32.xlu0 %v1374
        %v1376 = vpop.xlane.xlu0 %1375
        %v1377 = vadd.f32 %v1263, %v1265
        %1378 = vadd.xlane.f32.xlu0 %v1377
        %v1379 = vpop.xlane.xlu0 %1378
        %v1380 = vadd.f32 %v1267, %v1269
        %1381 = vadd.xlane.f32.xlu0 %v1380
        %v1382 = vpop.xlane.xlu0 %1381
        %v1383 = vadd.f32 %v1271, %v1273
        %1384 = vadd.xlane.f32.xlu0 %v1383
        %v1385 = vpop.xlane.xlu0 %1384
        %v1386 = vadd.f32 %v1275, %v1277
        %1387 = vadd.xlane.f32.xlu0 %v1386
        %v1388 = vpop.xlane.xlu0 %1387
        %v1389 = vadd.f32 %v1279, %v1281
        %1390 = vadd.xlane.f32.xlu0 %v1389
        %v1391 = vpop.xlane.xlu0 %1390
        %v1392 = vadd.f32 %v1283, %v1285
        %1393 = vadd.xlane.f32.xlu0 %v1392
        %v1394 = vpop.xlane.xlu0 %1393
        %v1395 = vadd.f32 %v1287, %v1289
        %1396 = vadd.xlane.f32.xlu0 %v1395
        %v1397 = vpop.xlane.xlu0 %1396
        %v1398 = vadd.f32 %v1291, %v1293
        %1399 = vadd.xlane.f32.xlu0 %v1398
        %v1400 = vpop.xlane.xlu0 %1399
        %v1401 = vadd.f32 %v1295, %v1297
        %1402 = vadd.xlane.f32.xlu0 %v1401
        %v1403 = vpop.xlane.xlu0 %1402
        %v1404 = vadd.f32 %v1299, %v1301
        %1405 = vadd.xlane.f32.xlu0 %v1404
        %v1406 = vpop.xlane.xlu0 %1405
        %v1407 = vadd.f32 %v1303, %v1305
        %1408 = vadd.xlane.f32.xlu0 %v1407
        %v1409 = vpop.xlane.xlu0 %1408
        %v1410 = vadd.f32 %v1307, %v1309
        %1411 = vadd.xlane.f32.xlu0 %v1410
        %v1412 = vpop.xlane.xlu0 %1411
        %v1413 = vadd.f32 %v1311, %v1313
        %1414 = vadd.xlane.f32.xlu0 %v1413
        %v1415 = vpop.xlane.xlu0 %1414
        %v1416 = vadd.f32 %v1315, %v1317
        %1417 = vadd.xlane.f32.xlu0 %v1416
        %v1418 = vpop.xlane.xlu0 %1417
        %v1419 = vadd.f32 %v1319, %v1321
        %1420 = vadd.xlane.f32.xlu0 %v1419
        %v1421 = vpop.xlane.xlu0 %1420
        %v1422 = vadd.f32 %v1323, %v1325
        %1423 = vadd.xlane.f32.xlu0 %v1422
        %v1424 = vpop.xlane.xlu0 %1423
        %v1425 = vadd.f32 %v1327, %v1329
        %1426 = vadd.xlane.f32.xlu0 %v1425
        %v1427 = vpop.xlane.xlu0 %1426
        %v1428 = vadd.f32 %v1331, %v1333
        %1429 = vadd.xlane.f32.xlu0 %v1428
        %v1430 = vpop.xlane.xlu0 %1429
        %v1431 = vadd.f32 %v1335, %v1337
        %1432 = vadd.xlane.f32.xlu0 %v1431
        %v1433 = vpop.xlane.xlu0 %1432
        %v1434 = vrcp.pop %v1340
        %v1435 = vrcp.pop %v1343
        %v1436 = vrcp.pop %v1346
        %v1437 = vrcp.pop %v1349
        %v1438 = vrcp.pop %v1352
        %v1439 = vrcp.pop %v1355
        %v1440 = vrcp.pop %v1358
        %v1441 = vrcp.pop %v1361
        %v1442 = vrcp.pop %v1364
        %v1443 = vrcp.pop %v1367
        %v1444 = vrcp.pop %v1370
        %v1445 = vrcp.pop %v1373
        %v1446 = vrcp.pop %v1376
        %v1447 = vrcp.pop %v1379
        %v1448 = vrcp.pop %v1382
        %v1449 = vrcp.pop %v1385
        %v1450 = vrcp.pop %v1388
        %v1451 = vrcp.pop %v1391
        %v1452 = vrcp.pop %v1394
        %v1453 = vrcp.pop %v1397
        %v1454 = vrcp.pop %v1400
        %v1455 = vrcp.pop %v1403
        %v1456 = vrcp.pop %v1406
        %v1457 = vrcp.pop %v1409
        %v1458 = vrcp.pop %v1412
        %v1459 = vrcp.pop %v1415
        %v1460 = vrcp.pop %v1418
        %v1461 = vrcp.pop %v1421
        %v1462 = vrcp.pop %v1424
        %v1463 = vrcp.pop %v1427
        %v1464 = vrcp.pop %v1430
        %v1465 = vrcp.pop %v1433
        %v1466 = vpack.c.bf16 %v1215, %v1211
        %v1467 = vpack.c.bf16 %v1217, %v1213
        %v1468 = vpack.c.bf16 %v1223, %v1219
        %v1469 = vpack.c.bf16 %v1225, %v1221
        %v1470 = vpack.c.bf16 %v1231, %v1227
        %v1471 = vpack.c.bf16 %v1233, %v1229
        %v1472 = vpack.c.bf16 %v1239, %v1235
        %v1473 = vpack.c.bf16 %v1241, %v1237
        %v1474 = vpack.c.bf16 %v1247, %v1243
        %v1475 = vpack.c.bf16 %v1249, %v1245
        %v1476 = vpack.c.bf16 %v1255, %v1251
        %v1477 = vpack.c.bf16 %v1257, %v1253
        %v1478 = vpack.c.bf16 %v1263, %v1259
        %v1479 = vpack.c.bf16 %v1265, %v1261
        %v1480 = vpack.c.bf16 %v1271, %v1267
        %v1481 = vpack.c.bf16 %v1273, %v1269
        %v1482 = vpack.c.bf16 %v1279, %v1275
        %v1483 = vpack.c.bf16 %v1281, %v1277
        %v1484 = vpack.c.bf16 %v1287, %v1283
        %v1485 = vpack.c.bf16 %v1289, %v1285
        %v1486 = vpack.c.bf16 %v1295, %v1291
        %v1487 = vpack.c.bf16 %v1297, %v1293
        %v1488 = vpack.c.bf16 %v1303, %v1299
        %v1489 = vpack.c.bf16 %v1305, %v1301
        %v1490 = vpack.c.bf16 %v1311, %v1307
        %v1491 = vpack.c.bf16 %v1313, %v1309
        %v1492 = vpack.c.bf16 %v1319, %v1315
        %v1493 = vpack.c.bf16 %v1321, %v1317
        %v1494 = vpack.c.bf16 %v1327, %v1323
        %v1495 = vpack.c.bf16 %v1329, %v1325
        %v1496 = vpack.c.bf16 %v1335, %v1331
        %v1497 = vpack.c.bf16 %v1337, %v1333
        %v1498 = vld [vmem:[%s313] sm:$0xf]
        %v1499 = vld [vmem:[%s313 + $0x4] sm:$0xf]
        %v1500 = vld [vmem:[%s313 + $0x8] sm:$0xf]
        %v1501 = vld [vmem:[%s313 + $0xc] sm:$0xf]
        %v1502 = vld [vmem:[%s313 + $0x10] sm:$0xf]
        %v1503 = vld [vmem:[%s313 + $0x14] sm:$0xf]
        %v1504 = vld [vmem:[%s313 + $0x18] sm:$0xf]
        %v1505 = vld [vmem:[%s313 + $0x1c] sm:$0xf]
        %v1506 = vld [vmem:[%s313 + $0x20] sm:$0xf]
        %v1507 = vld [vmem:[%s313 + $0x24] sm:$0xf]
        %v1508 = vld [vmem:[%s313 + $0x28] sm:$0xf]
        %v1509 = vld [vmem:[%s313 + $0x2c] sm:$0xf]
        %v1510 = vld [vmem:[%s313 + $0x30] sm:$0xf]
        %v1511 = vld [vmem:[%s313 + $0x34] sm:$0xf]
        %v1512 = vld [vmem:[%s313 + $0x38] sm:$0xf]
        %v1513 = vld [vmem:[%s313 + $0x3c] sm:$0xf]
        %v1514 = vld [vmem:[%s313 + $0x40] sm:$0xf]
        %v1515 = vld [vmem:[%s313 + $0x44] sm:$0xf]
        %v1516 = vld [vmem:[%s313 + $0x48] sm:$0xf]
        %v1517 = vld [vmem:[%s313 + $0x4c] sm:$0xf]
        %v1518 = vld [vmem:[%s313 + $0x50] sm:$0xf]
        %v1519 = vld [vmem:[%s313 + $0x54] sm:$0xf]
        %v1520 = vld [vmem:[%s313 + $0x58] sm:$0xf]
        %v1521 = vld [vmem:[%s313 + $0x5c] sm:$0xf]
        %v1522 = vld [vmem:[%s313 + $0x60] sm:$0xf]
        %v1523 = vld [vmem:[%s313 + $0x64] sm:$0xf]
        %v1524 = vld [vmem:[%s313 + $0x68] sm:$0xf]
        %v1525 = vld [vmem:[%s313 + $0x6c] sm:$0xf]
        %v1526 = vld [vmem:[%s313 + $0x70] sm:$0xf]
        %v1527 = vld [vmem:[%s313 + $0x74] sm:$0xf]
        %v1528 = vld [vmem:[%s313 + $0x78] sm:$0xf]
        %v1529 = vld [vmem:[%s313 + $0x7c] sm:$0xf]
        %v1562 = vunpack.c.l.b16 %v1498
        %v1563 = vunpack.c.l.b16 %v1499
        %v1564 = vunpack.c.l.b16 %v1500
        %v1565 = vunpack.c.l.b16 %v1501
        %v1566 = vunpack.c.l.b16 %v1502
        %v1567 = vunpack.c.l.b16 %v1503
        %v1568 = vunpack.c.l.b16 %v1504
        %v1569 = vunpack.c.l.b16 %v1505
        %v1570 = vunpack.c.l.b16 %v1506
        %v1571 = vunpack.c.l.b16 %v1507
        %v1572 = vunpack.c.l.b16 %v1508
        %v1573 = vunpack.c.l.b16 %v1509
        %v1574 = vunpack.c.l.b16 %v1510
        %v1575 = vunpack.c.l.b16 %v1511
        %v1576 = vunpack.c.l.b16 %v1512
        %v1577 = vunpack.c.l.b16 %v1513
        %v1578 = vunpack.c.l.b16 %v1514
        %v1579 = vunpack.c.l.b16 %v1515
        %v1580 = vunpack.c.l.b16 %v1516
        %v1581 = vunpack.c.l.b16 %v1517
        %v1582 = vunpack.c.l.b16 %v1518
        %v1583 = vunpack.c.l.b16 %v1519
        %v1584 = vunpack.c.l.b16 %v1520
        %v1585 = vunpack.c.l.b16 %v1521
        %v1586 = vunpack.c.l.b16 %v1522
        %v1587 = vunpack.c.l.b16 %v1523
        %v1588 = vunpack.c.l.b16 %v1524
        %v1589 = vunpack.c.l.b16 %v1525
        %v1590 = vunpack.c.l.b16 %v1526
        %v1591 = vunpack.c.l.b16 %v1527
        %v1592 = vunpack.c.l.b16 %v1528
        %v1593 = vunpack.c.l.b16 %v1529
        %v1594 = vpack.c.b16 %v1563, %v1562
        %v1595 = vpack.c.b16 %v1565, %v1564
        %v1596 = vpack.c.b16 %v1567, %v1566
        %v1597 = vpack.c.b16 %v1569, %v1568
        %v1598 = vpack.c.b16 %v1571, %v1570
        %v1599 = vpack.c.b16 %v1573, %v1572
        %v1600 = vpack.c.b16 %v1575, %v1574
        %v1601 = vpack.c.b16 %v1577, %v1576
        %v1602 = vpack.c.b16 %v1579, %v1578
        %v1603 = vpack.c.b16 %v1581, %v1580
        %v1604 = vpack.c.b16 %v1583, %v1582
        %v1605 = vpack.c.b16 %v1585, %v1584
        %v1606 = vpack.c.b16 %v1587, %v1586
        %v1607 = vpack.c.b16 %v1589, %v1588
        %v1608 = vpack.c.b16 %v1591, %v1590
        %v1609 = vpack.c.b16 %v1593, %v1592
        %1626 = vmatprep.subr.bf16.mxu0 0
        %1627 = vmatpush1.bf16.msra.mxu0 %v1594
        %1628 = vmatprep.subr.bf16.mxu0 0
        %1629 = vmatpush1.bf16.msra.mxu0 %v1595
        %1630 = vmatprep.subr.bf16.mxu0 0
        %1631 = vmatpush1.bf16.msra.mxu0 %v1596
        %1632 = vmatprep.subr.bf16.mxu0 0
        %1633 = vmatpush1.bf16.msra.mxu0 %v1597
        %1634 = vmatprep.subr.bf16.mxu0 0
        %1635 = vmatpush1.bf16.msra.mxu0 %v1598
        %1636 = vmatprep.subr.bf16.mxu0 0
        %1637 = vmatpush1.bf16.msra.mxu0 %v1599
        %1638 = vmatprep.subr.bf16.mxu0 0
        %1639 = vmatpush1.bf16.msra.mxu0 %v1600
        %1640 = vmatprep.subr.bf16.mxu0 0
        %1641 = vmatpush1.bf16.msra.mxu0 %v1601
        %1642 = vmatprep.subr.bf16.mxu0 0
        %1643 = vmatpush1.bf16.msra.mxu0 %v1602
        %1644 = vmatprep.subr.bf16.mxu0 0
        %1645 = vmatpush1.bf16.msra.mxu0 %v1603
        %1646 = vmatprep.subr.bf16.mxu0 0
        %1647 = vmatpush1.bf16.msra.mxu0 %v1604
        %1648 = vmatprep.subr.bf16.mxu0 0
        %1649 = vmatpush1.bf16.msra.mxu0 %v1605
        %1650 = vmatprep.subr.bf16.mxu0 0
        %1651 = vmatpush1.bf16.msra.mxu0 %v1606
        %1652 = vmatprep.subr.bf16.mxu0 0
        %1653 = vmatpush1.bf16.msra.mxu0 %v1607
        %1654 = vmatprep.subr.bf16.mxu0 0
        %1655 = vmatpush1.bf16.msra.mxu0 %v1608
        %1656 = vmatprep.subr.bf16.mxu0 0
        %1657 = vmatpush1.bf16.msra.mxu0 %v1609
        %1658 = vmatprep.mubr.bf16.mxu0 %v1467
        %1659 = vmatmul.mubr.bf16.gmra.mrb[0].mxu0 %v1466
        %v1660 = vpop.f32.mrb[0].mxu0
        %v1661 = vadd.f32 0.0, %v1660
        %v1662 = vpop.f32.mrb[0].mxu0
        %v1663 = vpop.f32.mrb[0].mxu0
        %v1664 = vadd.f32 0.0, %v1663
        %v1665 = vpop.f32.mrb[0].mxu0
        %1666 = vmatprep.mubr.bf16.mxu0 %v1469
        %1667 = vmatmul.mubr.bf16.gmra.mrb[0].mxu0 %v1468
        %v1668 = vpop.f32.mrb[0].mxu0
        %v1669 = vadd.f32 0.0, %v1668
        %v1670 = vpop.f32.mrb[0].mxu0
        %v1671 = vpop.f32.mrb[0].mxu0
        %v1672 = vadd.f32 0.0, %v1671
        %v1673 = vpop.f32.mrb[0].mxu0
        %1674 = vmatprep.mubr.bf16.mxu0 %v1471
        %1675 = vmatmul.mubr.bf16.gmra.mrb[0].mxu0 %v1470
        %v1676 = vpop.f32.mrb[0].mxu0
        %v1677 = vadd.f32 0.0, %v1676
        %v1678 = vpop.f32.mrb[0].mxu0
        %v1679 = vpop.f32.mrb[0].mxu0
        %v1680 = vadd.f32 0.0, %v1679
        %v1681 = vpop.f32.mrb[0].mxu0
        %1682 = vmatprep.mubr.bf16.mxu0 %v1473
        %1683 = vmatmul.mubr.bf16.gmra.mrb[0].mxu0 %v1472
        %v1684 = vpop.f32.mrb[0].mxu0
        %v1685 = vadd.f32 0.0, %v1684
        %v1686 = vpop.f32.mrb[0].mxu0
        %v1687 = vpop.f32.mrb[0].mxu0
        %v1688 = vadd.f32 0.0, %v1687
        %v1689 = vpop.f32.mrb[0].mxu0
        %1690 = vmatprep.mubr.bf16.mxu0 %v1475
        %1691 = vmatmul.mubr.bf16.gmra.mrb[0].mxu0 %v1474
        %v1692 = vpop.f32.mrb[0].mxu0
        %v1693 = vadd.f32 0.0, %v1692
        %v1694 = vpop.f32.mrb[0].mxu0
        %v1695 = vpop.f32.mrb[0].mxu0
        %v1696 = vadd.f32 0.0, %v1695
        %v1697 = vpop.f32.mrb[0].mxu0
        %1698 = vmatprep.mubr.bf16.mxu0 %v1477
        %1699 = vmatmul.mubr.bf16.gmra.mrb[0].mxu0 %v1476
        %v1700 = vpop.f32.mrb[0].mxu0
        %v1701 = vadd.f32 0.0, %v1700
        %v1702 = vpop.f32.mrb[0].mxu0
        %v1703 = vpop.f32.mrb[0].mxu0
        %v1704 = vadd.f32 0.0, %v1703
        %v1705 = vpop.f32.mrb[0].mxu0
        %1706 = vmatprep.mubr.bf16.mxu0 %v1479
        %1707 = vmatmul.mubr.bf16.gmra.mrb[0].mxu0 %v1478
        %v1708 = vpop.f32.mrb[0].mxu0
        %v1709 = vadd.f32 0.0, %v1708
        %v1710 = vpop.f32.mrb[0].mxu0
        %v1711 = vpop.f32.mrb[0].mxu0
        %v1712 = vadd.f32 0.0, %v1711
        %v1713 = vpop.f32.mrb[0].mxu0
        %1714 = vmatprep.mubr.bf16.mxu0 %v1481
        %1715 = vmatmul.mubr.bf16.gmra.mrb[0].mxu0 %v1480
        %v1716 = vpop.f32.mrb[0].mxu0
        %v1717 = vadd.f32 0.0, %v1716
        %v1718 = vpop.f32.mrb[0].mxu0
        %v1719 = vpop.f32.mrb[0].mxu0
        %v1720 = vadd.f32 0.0, %v1719
        %v1721 = vpop.f32.mrb[0].mxu0
        %1722 = vmatprep.mubr.bf16.mxu0 %v1483
        %1723 = vmatmul.mubr.bf16.gmra.mrb[0].mxu0 %v1482
        %v1724 = vpop.f32.mrb[0].mxu0
        %v1725 = vadd.f32 0.0, %v1724
        %v1726 = vpop.f32.mrb[0].mxu0
        %v1727 = vpop.f32.mrb[0].mxu0
        %v1728 = vadd.f32 0.0, %v1727
        %v1729 = vpop.f32.mrb[0].mxu0
        %1730 = vmatprep.mubr.bf16.mxu0 %v1485
        %1731 = vmatmul.mubr.bf16.gmra.mrb[0].mxu0 %v1484
        %v1732 = vpop.f32.mrb[0].mxu0
        %v1733 = vadd.f32 0.0, %v1732
        %v1734 = vpop.f32.mrb[0].mxu0
        %v1735 = vpop.f32.mrb[0].mxu0
        %v1736 = vadd.f32 0.0, %v1735
        %v1737 = vpop.f32.mrb[0].mxu0
        %1738 = vmatprep.mubr.bf16.mxu0 %v1487
        %1739 = vmatmul.mubr.bf16.gmra.mrb[0].mxu0 %v1486
        %v1740 = vpop.f32.mrb[0].mxu0
        %v1741 = vadd.f32 0.0, %v1740
        %v1742 = vpop.f32.mrb[0].mxu0
        %v1743 = vpop.f32.mrb[0].mxu0
        %v1744 = vadd.f32 0.0, %v1743
        %v1745 = vpop.f32.mrb[0].mxu0
        %1746 = vmatprep.mubr.bf16.mxu0 %v1489
        %1747 = vmatmul.mubr.bf16.gmra.mrb[0].mxu0 %v1488
        %v1748 = vpop.f32.mrb[0].mxu0
        %v1749 = vadd.f32 0.0, %v1748
        %v1750 = vpop.f32.mrb[0].mxu0
        %v1751 = vpop.f32.mrb[0].mxu0
        %v1752 = vadd.f32 0.0, %v1751
        %v1753 = vpop.f32.mrb[0].mxu0
        %1754 = vmatprep.mubr.bf16.mxu0 %v1491
        %1755 = vmatmul.mubr.bf16.gmra.mrb[0].mxu0 %v1490
        %v1756 = vpop.f32.mrb[0].mxu0
        %v1757 = vadd.f32 0.0, %v1756
        %v1758 = vpop.f32.mrb[0].mxu0
        %v1759 = vpop.f32.mrb[0].mxu0
        %v1760 = vadd.f32 0.0, %v1759
        %v1761 = vpop.f32.mrb[0].mxu0
        %1762 = vmatprep.mubr.bf16.mxu0 %v1493
        %1763 = vmatmul.mubr.bf16.gmra.mrb[0].mxu0 %v1492
        %v1764 = vpop.f32.mrb[0].mxu0
        %v1765 = vadd.f32 0.0, %v1764
        %v1766 = vpop.f32.mrb[0].mxu0
        %v1767 = vpop.f32.mrb[0].mxu0
        %v1768 = vadd.f32 0.0, %v1767
        %v1769 = vpop.f32.mrb[0].mxu0
        %1770 = vmatprep.mubr.bf16.mxu0 %v1495
        %1771 = vmatmul.mubr.bf16.gmra.mrb[0].mxu0 %v1494
        %v1772 = vpop.f32.mrb[0].mxu0
        %v1773 = vadd.f32 0.0, %v1772
        %v1774 = vpop.f32.mrb[0].mxu0
        %v1775 = vpop.f32.mrb[0].mxu0
        %v1776 = vadd.f32 0.0, %v1775
        %v1777 = vpop.f32.mrb[0].mxu0
        %1778 = vmatprep.mubr.bf16.mxu0 %v1497
        %1779 = vmatmul.mubr.bf16.gmra.mrb[0].mxu0 %v1496
        %v1780 = vpop.f32.mrb[0].mxu0
        %v1781 = vadd.f32 0.0, %v1780
        %v1782 = vpop.f32.mrb[0].mxu0
        %v1783 = vpop.f32.mrb[0].mxu0
        %v1784 = vadd.f32 0.0, %v1783
        %v1785 = vpop.f32.mrb[0].mxu0
        %1786 = vdwg.mxu0
        %v1787 = vmul.f32 %v1661, %v1434
        %v1788 = vmul.f32 %v1664, %v1435
        %v1789 = vmul.f32 %v1669, %v1436
        %v1790 = vmul.f32 %v1672, %v1437
        %v1791 = vmul.f32 %v1677, %v1438
        %v1792 = vmul.f32 %v1680, %v1439
        %v1793 = vmul.f32 %v1685, %v1440
        %v1794 = vmul.f32 %v1688, %v1441
        %v1795 = vmul.f32 %v1693, %v1442
        %v1796 = vmul.f32 %v1696, %v1443
        %v1797 = vmul.f32 %v1701, %v1444
        %v1798 = vmul.f32 %v1704, %v1445
        %v1799 = vmul.f32 %v1709, %v1446
        %v1800 = vmul.f32 %v1712, %v1447
        %v1801 = vmul.f32 %v1717, %v1448
        %v1802 = vmul.f32 %v1720, %v1449
        %v1803 = vmul.f32 %v1725, %v1450
        %v1804 = vmul.f32 %v1728, %v1451
        %v1805 = vmul.f32 %v1733, %v1452
        %v1806 = vmul.f32 %v1736, %v1453
        %v1807 = vmul.f32 %v1741, %v1454
        %v1808 = vmul.f32 %v1744, %v1455
        %v1809 = vmul.f32 %v1749, %v1456
        %v1810 = vmul.f32 %v1752, %v1457
        %v1811 = vmul.f32 %v1757, %v1458
        %v1812 = vmul.f32 %v1760, %v1459
        %v1813 = vmul.f32 %v1765, %v1460
        %v1814 = vmul.f32 %v1768, %v1461
        %v1815 = vmul.f32 %v1773, %v1462
        %v1816 = vmul.f32 %v1776, %v1463
        %v1817 = vmul.f32 %v1781, %v1464
        %v1818 = vmul.f32 %v1784, %v1465
        %v1819 = vpack.c.bf16 %v1788, %v1787
        %v1820 = vpack.c.bf16 %v1790, %v1789
        %v1821 = vpack.c.bf16 %v1792, %v1791
        %v1822 = vpack.c.bf16 %v1794, %v1793
        %v1823 = vpack.c.bf16 %v1796, %v1795
        %v1824 = vpack.c.bf16 %v1798, %v1797
        %v1825 = vpack.c.bf16 %v1800, %v1799
        %v1826 = vpack.c.bf16 %v1802, %v1801
        %v1827 = vpack.c.bf16 %v1804, %v1803
        %v1828 = vpack.c.bf16 %v1806, %v1805
        %v1829 = vpack.c.bf16 %v1808, %v1807
        %v1830 = vpack.c.bf16 %v1810, %v1809
        %v1831 = vpack.c.bf16 %v1812, %v1811
        %v1832 = vpack.c.bf16 %v1814, %v1813
        %v1833 = vpack.c.bf16 %v1816, %v1815
        %v1834 = vpack.c.bf16 %v1818, %v1817
        %v1851 = vunpack.c.l.b16 %v1819
        %v1852 = vunpack.c.h.b16 %v1819
        %v1853 = vunpack.c.l.b16 %v1820
        %v1854 = vunpack.c.h.b16 %v1820
        %v1855 = vunpack.c.l.b16 %v1821
        %v1856 = vunpack.c.h.b16 %v1821
        %v1857 = vunpack.c.l.b16 %v1822
        %v1858 = vunpack.c.h.b16 %v1822
        %v1859 = vunpack.c.l.b16 %v1823
        %v1860 = vunpack.c.h.b16 %v1823
        %v1861 = vunpack.c.l.b16 %v1824
        %v1862 = vunpack.c.h.b16 %v1824
        %v1863 = vunpack.c.l.b16 %v1825
        %v1864 = vunpack.c.h.b16 %v1825
        %v1865 = vunpack.c.l.b16 %v1826
        %v1866 = vunpack.c.h.b16 %v1826
        %v1867 = vunpack.c.l.b16 %v1827
        %v1868 = vunpack.c.h.b16 %v1827
        %v1869 = vunpack.c.l.b16 %v1828
        %v1870 = vunpack.c.h.b16 %v1828
        %v1871 = vunpack.c.l.b16 %v1829
        %v1872 = vunpack.c.h.b16 %v1829
        %v1873 = vunpack.c.l.b16 %v1830
        %v1874 = vunpack.c.h.b16 %v1830
        %v1875 = vunpack.c.l.b16 %v1831
        %v1876 = vunpack.c.h.b16 %v1831
        %v1877 = vunpack.c.l.b16 %v1832
        %v1878 = vunpack.c.h.b16 %v1832
        %v1879 = vunpack.c.l.b16 %v1833
        %v1880 = vunpack.c.h.b16 %v1833
        %v1881 = vunpack.c.l.b16 %v1834
        %v1882 = vunpack.c.h.b16 %v1834
        %v1883 = vpack.c.b16 %v1851, %v1851
        %v1884 = vpack.c.b16 %v1852, %v1852
        %v1885 = vpack.c.b16 %v1853, %v1853
        %v1886 = vpack.c.b16 %v1854, %v1854
        %v1887 = vpack.c.b16 %v1855, %v1855
        %v1888 = vpack.c.b16 %v1856, %v1856
        %v1889 = vpack.c.b16 %v1857, %v1857
        %v1890 = vpack.c.b16 %v1858, %v1858
        %v1891 = vpack.c.b16 %v1859, %v1859
        %v1892 = vpack.c.b16 %v1860, %v1860
        %v1893 = vpack.c.b16 %v1861, %v1861
        %v1894 = vpack.c.b16 %v1862, %v1862
        %v1895 = vpack.c.b16 %v1863, %v1863
        %v1896 = vpack.c.b16 %v1864, %v1864
        %v1897 = vpack.c.b16 %v1865, %v1865
        %v1898 = vpack.c.b16 %v1866, %v1866
        %v1899 = vpack.c.b16 %v1867, %v1867
        %v1900 = vpack.c.b16 %v1868, %v1868
        %v1901 = vpack.c.b16 %v1869, %v1869
        %v1902 = vpack.c.b16 %v1870, %v1870
        %v1903 = vpack.c.b16 %v1871, %v1871
        %v1904 = vpack.c.b16 %v1872, %v1872
        %v1905 = vpack.c.b16 %v1873, %v1873
        %v1906 = vpack.c.b16 %v1874, %v1874
        %v1907 = vpack.c.b16 %v1875, %v1875
        %v1908 = vpack.c.b16 %v1876, %v1876
        %v1909 = vpack.c.b16 %v1877, %v1877
        %v1910 = vpack.c.b16 %v1878, %v1878
        %v1911 = vpack.c.b16 %v1879, %v1879
        %v1912 = vpack.c.b16 %v1880, %v1880
        %v1913 = vpack.c.b16 %v1881, %v1881
        %v1914 = vpack.c.b16 %v1882, %v1882
        %1947 = vst [vmem:[%s349] sm:$0xf] %v1883
        %1948 = vst [vmem:[%s349 + $0x4] sm:$0xf] %v1884
        %1949 = vst [vmem:[%s349 + $0x8] sm:$0xf] %v1885
        %1950 = vst [vmem:[%s349 + $0xc] sm:$0xf] %v1886
        %1951 = vst [vmem:[%s349 + $0x10] sm:$0xf] %v1887
        %1952 = vst [vmem:[%s349 + $0x14] sm:$0xf] %v1888
        %1953 = vst [vmem:[%s349 + $0x18] sm:$0xf] %v1889
        %1954 = vst [vmem:[%s349 + $0x1c] sm:$0xf] %v1890
        %1955 = vst [vmem:[%s349 + $0x20] sm:$0xf] %v1891
        %1956 = vst [vmem:[%s349 + $0x24] sm:$0xf] %v1892
        %1957 = vst [vmem:[%s349 + $0x28] sm:$0xf] %v1893
        %1958 = vst [vmem:[%s349 + $0x2c] sm:$0xf] %v1894
        %1959 = vst [vmem:[%s349 + $0x30] sm:$0xf] %v1895
        %1960 = vst [vmem:[%s349 + $0x34] sm:$0xf] %v1896
        %1961 = vst [vmem:[%s349 + $0x38] sm:$0xf] %v1897
        %1962 = vst [vmem:[%s349 + $0x3c] sm:$0xf] %v1898
        %1963 = vst [vmem:[%s349 + $0x40] sm:$0xf] %v1899
        %1964 = vst [vmem:[%s349 + $0x44] sm:$0xf] %v1900
        %1965 = vst [vmem:[%s349 + $0x48] sm:$0xf] %v1901
        %1966 = vst [vmem:[%s349 + $0x4c] sm:$0xf] %v1902
        %1967 = vst [vmem:[%s349 + $0x50] sm:$0xf] %v1903
        %1968 = vst [vmem:[%s349 + $0x54] sm:$0xf] %v1904
        %1969 = vst [vmem:[%s349 + $0x58] sm:$0xf] %v1905
        %1970 = vst [vmem:[%s349 + $0x5c] sm:$0xf] %v1906
        %1971 = vst [vmem:[%s349 + $0x60] sm:$0xf] %v1907
        %1972 = vst [vmem:[%s349 + $0x64] sm:$0xf] %v1908
        %1973 = vst [vmem:[%s349 + $0x68] sm:$0xf] %v1909
        %1974 = vst [vmem:[%s349 + $0x6c] sm:$0xf] %v1910
        %1975 = vst [vmem:[%s349 + $0x70] sm:$0xf] %v1911
        %1976 = vst [vmem:[%s349 + $0x74] sm:$0xf] %v1912
        %1977 = vst [vmem:[%s349 + $0x78] sm:$0xf] %v1913
        %1978 = vst [vmem:[%s349 + $0x7c] sm:$0xf] %v1914
        %s1979 = sand.u32 %s167, 1
        %s1980 = scalar_lea.sflag [#allocation7], %s1979
        %s1981 = sand.u32 %s167, 1
        %s1982 = smul.addr %s1981, 128
        %s1983 = scalar_lea.vmem [#allocation12], %s1982
        // Predicated region
        $region57: #{tpu_custom_call.1} parent=39 // pred_check
          %p1984 = pneg %p177
        $region58: #{tpu_custom_call.1} parent=39 // pred_check_branch
          %1986 = sbr.rel (%p1984) target = $region60
        $region59: #{tpu_custom_call.1} parent=39 // pred_region
          %s1987 = smul.u32 32, %s28
          %s1989 = ssub.s32 2048, 2048
          %1990 = vsyncadd %s1980, %s1989
          %s1991 = smul.addr %s27, 32
          %s1992 = sadd.s32 %s1987, %s1991
          %s1993 = smul.addr %s1992, 64
          %s1994 = scalar_lea.hbm %s5, %s1993
          %s1995 = sshll.u32 %s1983, 4
          %s1996 = int_to_ptr.vmem [resolvable:$true] %s1995
          %2001 = dma.vmem_to_hbm [thread:$0]  %s1996, 2048, %s1994, %s1980, 64, 64, 4
        $region60: #{tpu_custom_call.1} parent=39 // pred_fallthru
          _
      $region40: #{tpu_custom_call.1} parent=5 // pred_fallthru
        _
      %p2002 = scmp.le.s32.totalorder 2, %s18
      // Predicated region
      $region61: #{tpu_custom_call.1} parent=5 // pred_check
        %p2003 = pneg %p2002
      $region62: #{tpu_custom_call.1} parent=5 // pred_check_branch
        %2005 = sbr.rel (%p2003) target = $region64
      $region63: #{tpu_custom_call.1} parent=5 // pred_region
        %s2006 = ssub.s32 %s18, 2
        // Predicated region
        $region65: #{tpu_custom_call.1} parent=63 // pred_check
          %p2007 = pneg %p183
        $region66: #{tpu_custom_call.1} parent=63 // pred_check_branch
          %2009 = sbr.rel (%p2007) target = $region68
        $region67: #{tpu_custom_call.1} parent=63 // pred_region
          %s2010 = sand.u32 %s168, 1
          %s2011 = scalar_lea.sflag [#allocation7], %s2010
          %s2012 = sand.u32 %s168, 1
          %s2013 = smul.addr %s2012, 128
          %s2014 = scalar_lea.vmem [#allocation12], %s2013
          %2015 = dma.done %s2011, 2048
        $region68: #{tpu_custom_call.1} parent=63 // pred_fallthru
          _
      $region64: #{tpu_custom_call.1} parent=5 // pred_fallthru
        _
    $region6: #{tpu_custom_call.1} parent=1 // loop_footer
      %s22 = sadd.s32 1, %s18
    $region7: #{tpu_custom_call.1} parent=1 // loop_footer_branch
      %17 = sbr.rel target = $region3
    $region8: #{tpu_custom_call.1} parent=1 // loop_exit
      _
    %2016 = vsyncpa [#allocation6], 1
    %s2017 = scalar_lea.sflag [#allocation6], 1
    %2018 = vsyncpa %s2017, 1
    %2019 = vsyncpa [#allocation9], 1
    %2020 = vsyncpa [#allocation7], 1
    %s2021 = scalar_lea.sflag [#allocation7], 1
    %2022 = vsyncpa %s2021, 1

</llo_original>
